<compile_context>
chip_gen: v7x
topology: tpu7x:2x2x1
jax: 0.10.0
libtpu: 0.0.40
codegen_flags: <defaults>
</compile_context>

<pallas_src>
import functools

import jax
import jax.numpy as jnp
from jax.experimental import pallas as pl
from jax.experimental.pallas import tpu as pltpu


def _attention_kernel(x_ref, wq_ref, wk_ref, wv_ref, bq_ref, bv_ref,
                      wproj_ref, bproj_ref, rpb_ref, mbias_ref,
                      o_ref, ctx_ref, acc_ref, *, head_dim):
    # One (batch-tile bt, head-group hg) grid step.
    #   x_ref:     (Bt, N, C)        activations (native dtype)
    #   wq/wk/wv:  (1, C, g*hd)      per-group slices of qkv.weight.T (scale folded into wq)
    #   bq/bv:     (1, 1, g*hd)      per-group q/v biases (scale folded into bq)
    #   wproj_ref: (1, g*hd, C)      per-group rows of proj.weight.T
    #   bproj_ref: (1, C)            proj bias
    #   rpb_ref:   (g, N, N)         relative position bias for this head group (fp32)
    #   mbias_ref: (Bt, 1, N)        additive key mask: 0 keep / -1e30 masked (fp32)
    #   o_ref:     (Bt, N, C)        output (written at last head group)
    #   ctx_ref:   (Bt*N, g*hd)      scratch: per-group context (native dtype)
    #   acc_ref:   (Bt*N, C) fp32    scratch: accumulated projected outputs
    hg = pl.program_id(1)
    n_hg = pl.num_programs(1)

    bt, n, c = x_ref.shape
    g = rpb_ref.shape[0]
    hd = head_dim
    dtype = x_ref.dtype

    @pl.when(hg == 0)
    def _init():
        acc_ref[...] = jnp.zeros_like(acc_ref)

    xf = x_ref[...].reshape(bt * n, c)

    # Wide per-group QKV GEMMs: native-dtype operands, fp32 accumulation.
    q = (jnp.dot(xf, wq_ref[0], preferred_element_type=jnp.float32)
         + bq_ref[0].astype(jnp.float32)).astype(dtype)       # (Bt*N, g*hd), scaled
    k = jnp.dot(xf, wk_ref[0],
                preferred_element_type=jnp.float32).astype(dtype)
    v = (jnp.dot(xf, wv_ref[0], preferred_element_type=jnp.float32)
         + bv_ref[0].astype(jnp.float32)).astype(dtype)

    q = q.reshape(bt, n, g * hd)
    k = k.reshape(bt, n, g * hd)
    v = v.reshape(bt, n, g * hd)

    mbias = mbias_ref[...]                                    # (Bt, 1, N) fp32

    # Static unroll over the g heads in this group (logits K = hd is inherent).
    for i in range(g):
        sl = slice(i * hd, (i + 1) * hd)
        s = jnp.einsum("bnd,bmd->bnm", q[..., sl], k[..., sl],
                       preferred_element_type=jnp.float32)    # (Bt, N, N) fp32
        s = s + rpb_ref[i][None].astype(jnp.float32) + mbias
        # Numerically-stable softmax; denominator on the EUP (approx reciprocal).
        s = s - jnp.max(s, axis=-1, keepdims=True)
        p = jnp.exp(s)
        p = p * pl.reciprocal(jnp.sum(p, axis=-1, keepdims=True), approx=True)
        p = p.astype(dtype)                                   # torch: softmax(...).type_as(x)
        ctx_i = jnp.einsum("bnm,bmd->bnd", p, v[..., sl],
                           preferred_element_type=jnp.float32)
        ctx_ref[:, sl] = ctx_i.reshape(bt * n, hd).astype(dtype)

    # This head group's slice of the output projection: K = g*hd, fp32 accumulate.
    acc_ref[...] += jnp.dot(ctx_ref[...], wproj_ref[0],
                            preferred_element_type=jnp.float32)

    @pl.when(hg == n_hg - 1)
    def _finalize():
        out = acc_ref[...] + bproj_ref[...].astype(jnp.float32)
        o_ref[...] = out.reshape(bt, n, c).astype(o_ref.dtype)


def attention_pallas(x, wqkv, bqkv, wproj, bproj, rpb=None, mask=None, *,
                     num_heads, block_b=None, block_heads=None):
    B, N, C = x.shape
    H = num_heads
    hd = C // H
    scale = hd ** (-0.5)
    dtype = x.dtype
    itemsize = jnp.dtype(dtype).itemsize

    # ---- block-size heuristics -------------------------------------------------
    if block_heads is None:
        block_heads = max(1, min(H, -(-256 // hd)))     # target ~256-deep proj K
        # keep the (g, N, N) fp32 rpb block modest (x2 pipeline buffers) and divisible.
        while block_heads > 1 and (H % block_heads or
                                   block_heads * N * N * 4 > (8 << 20)):
            block_heads -= 1
    if block_b is None:
        block_b = 1
        for d in range(1, B + 1):
            if B % d == 0 and d * N * C * itemsize <= (4 << 20):
                block_b = d
    g = block_heads
    Hg = H // g
    Bt = block_b
    assert H % g == 0 and B % Bt == 0

    if bqkv is None:
        bqkv = jnp.zeros((3 * C,), dtype=dtype)

    # ---- one-time weight re-layout in XLA (free relative to the kernel) ---------
    # qkv.weight (3C, C): output columns ordered (3, H, hd).  Transpose, split q/k/v,
    # group heads, fold `scale` into the q weight and q bias.
    wt = wqkv.T                                               # (C, 3C)
    wq_h = (wt[:, 0 * C:1 * C] * scale).astype(dtype).reshape(C, Hg, g * hd).transpose(1, 0, 2)
    wk_h = wt[:, 1 * C:2 * C].astype(dtype).reshape(C, Hg, g * hd).transpose(1, 0, 2)
    wv_h = wt[:, 2 * C:3 * C].astype(dtype).reshape(C, Hg, g * hd).transpose(1, 0, 2)
    bq_h = (bqkv[0 * C:1 * C] * scale).astype(dtype).reshape(Hg, 1, g * hd)
    bv_h = bqkv[2 * C:3 * C].astype(dtype).reshape(Hg, 1, g * hd)
    # proj.weight (C, C) -> per-group rows of proj.weight.T : (Hg, g*hd, C)
    wproj_g = wproj.T.astype(dtype).reshape(Hg, g * hd, C)
    bproj2 = bproj.reshape(1, C)

    if rpb is None:
        rpb = jnp.zeros((H, N, N), dtype=jnp.float32)
    rpb = rpb.astype(jnp.float32)

    if mask is None:
        mbias = jnp.zeros((B, 1, N), dtype=jnp.float32)
    else:
        m = mask.reshape(B, N).astype(jnp.float32)
        # Additive key-mask bias (fully-masked rows give a uniform distribution
        # instead of the NaN the torch -inf fill would produce).
        mbias = jnp.where(m > 0.5, 0.0, -1e30).astype(jnp.float32).reshape(B, 1, N)

    # ---- VMEM budget: per-step residency (x2 pipeline buffers) + scratch + temps --
    vmem_est = 2 * (2 * Bt * N * C * itemsize               # x + out blocks
                    + 3 * C * g * hd * itemsize             # wq, wk, wv
                    + g * hd * C * itemsize                 # wproj rows
                    + g * N * N * 4                         # rpb
                    + Bt * N * 4)                           # mask bias
    vmem_est += Bt * N * C * 4 + Bt * N * g * hd * itemsize  # acc + ctx scratch
    vmem_est += 4 * Bt * N * N * 4 + 3 * Bt * N * g * hd * 4  # in-kernel temporaries
    vmem_limit = int(min(64 << 20, max(32 << 20, 2 * vmem_est)))

    kernel = functools.partial(_attention_kernel, head_dim=hd)

    return pl.pallas_call(
        kernel,
        out_shape=jax.ShapeDtypeStruct((B, N, C), dtype),
        grid_spec=pltpu.PrefetchScalarGridSpec(
            num_scalar_prefetch=0,
            grid=(B // Bt, Hg),
            in_specs=[
                pl.BlockSpec((Bt, N, C), lambda b, h: (b, 0, 0)),        # x
                pl.BlockSpec((1, C, g * hd), lambda b, h: (h, 0, 0)),    # wq (scaled)
                pl.BlockSpec((1, C, g * hd), lambda b, h: (h, 0, 0)),    # wk
                pl.BlockSpec((1, C, g * hd), lambda b, h: (h, 0, 0)),    # wv
                pl.BlockSpec((1, 1, g * hd), lambda b, h: (h, 0, 0)),    # q bias (scaled)
                pl.BlockSpec((1, 1, g * hd), lambda b, h: (h, 0, 0)),    # v bias
                pl.BlockSpec((1, g * hd, C), lambda b, h: (h, 0, 0)),    # proj rows
                pl.BlockSpec((1, C), lambda b, h: (0, 0)),               # proj bias
                pl.BlockSpec((g, N, N), lambda b, h: (h, 0, 0)),         # rel-pos bias
                pl.BlockSpec((Bt, 1, N), lambda b, h: (b, 0, 0)),        # key-mask bias
            ],
            out_specs=pl.BlockSpec((Bt, N, C), lambda b, h: (b, 0, 0)),
            scratch_shapes=[pltpu.VMEM((Bt * N, g * hd), dtype),
                            pltpu.VMEM((Bt * N, C), jnp.float32)],
        ),
        compiler_params=pltpu.CompilerParams(
            dimension_semantics=("parallel", "arbitrary"),
            vmem_limit_bytes=vmem_limit),
    )(x, wq_h, wk_h, wv_h, bq_h, bv_h, wproj_g, bproj2, rpb, mbias)


def attention_ref(x, wqkv, bqkv, wproj, bproj, rpb, mask, *, num_heads):
    """Pure-JAX reference mirroring the PyTorch forward exactly (fp32-exact matmuls)."""
    B, N, C = x.shape
    hd = C // num_heads
    scale = hd ** (-0.5)
    hp = jax.lax.Precision.HIGHEST
    qkv = jnp.einsum("bnc,oc->bno", x, wqkv, precision=hp) + bqkv
    qkv = qkv.reshape(B, N, 3, num_heads, hd).transpose(2, 0, 3, 1, 4)
    q, k, v = qkv[0] * scale, qkv[1], qkv[2]
    attn = jnp.einsum("bhnd,bhmd->bhnm", q.astype(jnp.float32),
                      k.astype(jnp.float32), precision=hp)
    attn = attn + rpb[None]
    attn = jnp.where(mask[:, None, None, :] > 0.5, attn, -jnp.inf)
    attn = jax.nn.softmax(attn, axis=-1).astype(x.dtype)
    out = jnp.einsum("bhnm,bhmd->bhnd", attn, v, precision=hp)
    out = out.transpose(0, 2, 1, 3).reshape(B, N, C)
    return jnp.einsum("bnc,oc->bno", out, wproj, precision=hp) + bproj


if __name__ == "__main__":
    # Small self-consistent shapes: dim=32, num_heads=8 (head_dim=4), B=2, N=8.
    B, N, C, H = 2, 8, 32, 8

    key = jax.random.PRNGKey(0)
    kx, kw1, kb1q, kb1v, kw2, kb2, krpb = jax.random.split(key, 7)

    x = jax.random.normal(kx, (B, N, C), dtype=jnp.float32)

    # Parameters (deterministic synthetic init, shapes from Attention.__init__).
    wqkv = jax.random.normal(kw1, (3 * C, C), dtype=jnp.float32) * 0.05
    q_bias = jax.random.normal(kb1q, (C,), dtype=jnp.float32) * 0.05
    v_bias = jax.random.normal(kb1v, (C,), dtype=jnp.float32) * 0.05
    # qkv_bias = cat(q_bias, zeros_like(v_bias), v_bias)  (as in the torch forward)
    bqkv = jnp.concatenate([q_bias, jnp.zeros_like(v_bias), v_bias])
    wproj = jax.random.normal(kw2, (C, C), dtype=jnp.float32) * 0.05
    bproj = jax.random.normal(kb2, (C,), dtype=jnp.float32) * 0.05

    # Optional inputs: relative position bias (H, N, N) and key mask (B, N).
    rpb = jax.random.normal(krpb, (H, N, N), dtype=jnp.float32) * 0.1
    mask = jnp.ones((B, N), dtype=jnp.float32).at[1, -2:].set(0.0)

    # block_b=1, block_heads=4 exercises both grid axes (batch tiles and
    # head-group accumulation); production shapes would use the defaults.
    out = attention_pallas(x, wqkv, bqkv, wproj, bproj, rpb, mask,
                           num_heads=H, block_b=1, block_heads=4)
    out = jax.block_until_ready(out)

    ref = attention_ref(x, wqkv, bqkv, wproj, bproj, rpb, mask, num_heads=H)
    assert out.shape == (B, N, C)
    max_err = jnp.max(jnp.abs(out - ref))
    # Tolerance covers the EUP approximate reciprocal in the softmax denominator.
    assert jnp.allclose(out, ref, rtol=2e-3, atol=2e-3), f"max abs err = {max_err}"

    print("KERNEL_OK")
</pallas_src>

<mosaic_0001>
module attributes {stable_mosaic.version = 11 : i64} {
  func.func @_attention_kernel(%arg0: i32, %arg1: i32, %arg2: memref<1x8x32xf32, #tpu.memory_space<vmem>>, %arg3: memref<1x32x16xf32, #tpu.memory_space<vmem>>, %arg4: memref<1x32x16xf32, #tpu.memory_space<vmem>>, %arg5: memref<1x32x16xf32, #tpu.memory_space<vmem>>, %arg6: memref<1x1x16xf32, #tpu.memory_space<vmem>>, %arg7: memref<1x1x16xf32, #tpu.memory_space<vmem>>, %arg8: memref<1x16x32xf32, #tpu.memory_space<vmem>>, %arg9: memref<1x32xf32, #tpu.memory_space<vmem>>, %arg10: memref<4x8x8xf32, #tpu.memory_space<vmem>>, %arg11: memref<1x1x8xf32, #tpu.memory_space<vmem>>, %arg12: memref<1x8x32xf32, #tpu.memory_space<vmem>>, %arg13: memref<8x16xf32, #tpu.memory_space<vmem>>, %arg14: memref<8x32xf32, #tpu.memory_space<vmem>>) attributes {dimension_semantics = [#tpu.dimension_semantics<parallel>, #tpu.dimension_semantics<arbitrary>], iteration_bounds = array<i64: 2, 2>, scalar_prefetch = 0 : i64, scratch_operands = 2 : i64, tpu.core_type = #tpu.core_type<tc>, window_params = [{transform_indices = @transform_0, window_bounds = array<i64: 1, 8, 32>}, {transform_indices = @transform_1, window_bounds = array<i64: 1, 32, 16>}, {transform_indices = @transform_2, window_bounds = array<i64: 1, 32, 16>}, {transform_indices = @transform_3, window_bounds = array<i64: 1, 32, 16>}, {transform_indices = @transform_4, window_bounds = array<i64: 1, 1, 16>}, {transform_indices = @transform_5, window_bounds = array<i64: 1, 1, 16>}, {transform_indices = @transform_6, window_bounds = array<i64: 1, 16, 32>}, {pipeline_mode = #tpu.pipeline_mode<synchronous>, transform_indices = @transform_7, window_bounds = array<i64: 1, 32>}, {transform_indices = @transform_8, window_bounds = array<i64: 4, 8, 8>}, {transform_indices = @transform_9, window_bounds = array<i64: 1, 1, 8>}, {transform_indices = @transform_10, window_bounds = array<i64: 1, 8, 32>}]} {
    %c0_i32 = arith.constant 0 : i32
    %0 = arith.cmpi eq, %arg1, %c0_i32 : i32
    %1 = arith.extui %0 : i1 to i32
    %c0_i32_0 = arith.constant 0 : i32
    %2 = arith.cmpi ne, %1, %c0_i32_0 : i32
    scf.if %2 {
      %cst_64 = arith.constant 0.000000e+00 : f32
      %128 = vector.broadcast %cst_64 : f32 to vector<8x32xf32>
      %c0_65 = arith.constant 0 : index
      %c0_66 = arith.constant 0 : index
      %129 = vector.load %arg14[%c0_65, %c0_66] : memref<8x32xf32, #tpu.memory_space<vmem>>, vector<8x32xf32>
      tpu.vector_store %arg14[%c0_65, %c0_66], %128 {strides = array<i32>} : memref<8x32xf32, #tpu.memory_space<vmem>>, vector<8x32xf32>,
    } else {
    }
    %c0 = arith.constant 0 : index
    %c0_1 = arith.constant 0 : index
    %c0_2 = arith.constant 0 : index
    %3 = vector.load %arg2[%c0, %c0_1, %c0_2] : memref<1x8x32xf32, #tpu.memory_space<vmem>>, vector<1x8x32xf32>
    %4 = vector.shape_cast %3 : vector<1x8x32xf32> to vector<8x32xf32>
    %c0_3 = arith.constant 0 : index
    %c0_4 = arith.constant 0 : index
    %c0_5 = arith.constant 0 : index
    %5 = vector.load %arg3[%c0_3, %c0_4, %c0_5] : memref<1x32x16xf32, #tpu.memory_space<vmem>>, vector<1x32x16xf32>
    %6 = vector.shape_cast %5 : vector<1x32x16xf32> to vector<32x16xf32>
    %cst = arith.constant dense<0.000000e+00> : vector<8x16xf32>
    %7 = tpu.matmul %4, %6, %cst {dimension_numbers = #tpu.dot_dimension_numbers<[1], [0], [0], [1], [0, 0, 1, 1], [], []>} : vector<8x32xf32>, vector<32x16xf32>, vector<8x16xf32> -> vector<8x16xf32>
    %c0_6 = arith.constant 0 : index
    %c0_7 = arith.constant 0 : index
    %c0_8 = arith.constant 0 : index
    %8 = vector.load %arg6[%c0_6, %c0_7, %c0_8] : memref<1x1x16xf32, #tpu.memory_space<vmem>>, vector<1x1x16xf32>
    %9 = vector.shape_cast %8 : vector<1x1x16xf32> to vector<1x16xf32>
    %10 = vector.broadcast %9 : vector<1x16xf32> to vector<8x16xf32>
    %11 = arith.addf %7, %10 : vector<8x16xf32>
    %c0_9 = arith.constant 0 : index
    %c0_10 = arith.constant 0 : index
    %c0_11 = arith.constant 0 : index
    %12 = vector.load %arg4[%c0_9, %c0_10, %c0_11] : memref<1x32x16xf32, #tpu.memory_space<vmem>>, vector<1x32x16xf32>
    %13 = vector.shape_cast %12 : vector<1x32x16xf32> to vector<32x16xf32>
    %cst_12 = arith.constant dense<0.000000e+00> : vector<8x16xf32>
    %14 = tpu.matmul %4, %13, %cst_12 {dimension_numbers = #tpu.dot_dimension_numbers<[1], [0], [0], [1], [0, 0, 1, 1], [], []>} : vector<8x32xf32>, vector<32x16xf32>, vector<8x16xf32> -> vector<8x16xf32>
    %c0_13 = arith.constant 0 : index
    %c0_14 = arith.constant 0 : index
    %c0_15 = arith.constant 0 : index
    %15 = vector.load %arg5[%c0_13, %c0_14, %c0_15] : memref<1x32x16xf32, #tpu.memory_space<vmem>>, vector<1x32x16xf32>
    %16 = vector.shape_cast %15 : vector<1x32x16xf32> to vector<32x16xf32>
    %cst_16 = arith.constant dense<0.000000e+00> : vector<8x16xf32>
    %17 = tpu.matmul %4, %16, %cst_16 {dimension_numbers = #tpu.dot_dimension_numbers<[1], [0], [0], [1], [0, 0, 1, 1], [], []>} : vector<8x32xf32>, vector<32x16xf32>, vector<8x16xf32> -> vector<8x16xf32>
    %c0_17 = arith.constant 0 : index
    %c0_18 = arith.constant 0 : index
    %c0_19 = arith.constant 0 : index
    %18 = vector.load %arg7[%c0_17, %c0_18, %c0_19] : memref<1x1x16xf32, #tpu.memory_space<vmem>>, vector<1x1x16xf32>
    %19 = vector.shape_cast %18 : vector<1x1x16xf32> to vector<1x16xf32>
    %20 = vector.broadcast %19 : vector<1x16xf32> to vector<8x16xf32>
    %21 = arith.addf %17, %20 : vector<8x16xf32>
    %22 = vector.shape_cast %11 : vector<8x16xf32> to vector<1x8x16xf32>
    %23 = vector.shape_cast %14 : vector<8x16xf32> to vector<1x8x16xf32>
    %24 = vector.shape_cast %21 : vector<8x16xf32> to vector<1x8x16xf32>
    %c0_20 = arith.constant 0 : index
    %c0_21 = arith.constant 0 : index
    %c0_22 = arith.constant 0 : index
    %25 = vector.load %arg11[%c0_20, %c0_21, %c0_22] : memref<1x1x8xf32, #tpu.memory_space<vmem>>, vector<1x1x8xf32>
    %26 = vector.extract_strided_slice %22 {offsets = [0, 0, 0], sizes = [1, 8, 4], strides = [1, 1, 1]} : vector<1x8x16xf32> to vector<1x8x4xf32>
    %27 = vector.extract_strided_slice %23 {offsets = [0, 0, 0], sizes = [1, 8, 4], strides = [1, 1, 1]} : vector<1x8x16xf32> to vector<1x8x4xf32>
    "tpu.trace_start"() <{level = 10 : i32, message = "bnd,bmd->bnm"}> : () -> ()
    %cst_23 = arith.constant dense<0.000000e+00> : vector<1x8x8xf32>
    %28 = tpu.matmul %26, %27, %cst_23 {dimension_numbers = #tpu.dot_dimension_numbers<[2], [2], [1], [1], [0, 0, 0, 1, 1, 1], [0], [0]>} : vector<1x8x4xf32>, vector<1x8x4xf32>, vector<1x8x8xf32> -> vector<1x8x8xf32>
    "tpu.trace_stop"() : () -> ()
    %c0_24 = arith.constant 0 : index
    %c0_25 = arith.constant 0 : index
    %c0_26 = arith.constant 0 : index
    %29 = vector.load %arg10[%c0_24, %c0_25, %c0_26] : memref<4x8x8xf32, #tpu.memory_space<vmem>>, vector<1x8x8xf32>
    %30 = vector.shape_cast %29 : vector<1x8x8xf32> to vector<8x8xf32>
    %31 = vector.shape_cast %30 : vector<8x8xf32> to vector<1x8x8xf32>
    %32 = arith.addf %28, %31 : vector<1x8x8xf32>
    %33 = vector.broadcast %25 : vector<1x1x8xf32> to vector<1x8x8xf32>
    %34 = arith.addf %32, %33 : vector<1x8x8xf32>
    %cst_27 = arith.constant dense<0xFF800000> : vector<1x8xf32>
    %35 = vector.multi_reduction <maximumf>, %34, %cst_27 [2] : vector<1x8x8xf32> to vector<1x8xf32>
    %36 = vector.shape_cast %35 : vector<1x8xf32> to vector<1x8x1xf32>
    %37 = vector.broadcast %36 : vector<1x8x1xf32> to vector<1x8x8xf32>
    %38 = arith.subf %34, %37 : vector<1x8x8xf32>
    %39 = math.exp %38 : vector<1x8x8xf32>
    %cst_28 = arith.constant dense<0.000000e+00> : vector<1x8xf32>
    %40 = vector.multi_reduction <add>, %39, %cst_28 [2] : vector<1x8x8xf32> to vector<1x8xf32>
    %41 = vector.shape_cast %40 : vector<1x8xf32> to vector<1x8x1xf32>
    %42 = tpu.reciprocal %41 {approx = true} : vector<1x8x1xf32> -> vector<1x8x1xf32>
    %43 = vector.broadcast %42 : vector<1x8x1xf32> to vector<1x8x8xf32>
    %44 = arith.mulf %39, %43 : vector<1x8x8xf32>
    %45 = vector.extract_strided_slice %24 {offsets = [0, 0, 0], sizes = [1, 8, 4], strides = [1, 1, 1]} : vector<1x8x16xf32> to vector<1x8x4xf32>
    "tpu.trace_start"() <{level = 10 : i32, message = "bnm,bmd->bnd"}> : () -> ()
    %cst_29 = arith.constant dense<0.000000e+00> : vector<1x8x4xf32>
    %46 = tpu.matmul %44, %45, %cst_29 {dimension_numbers = #tpu.dot_dimension_numbers<[2], [1], [1], [2], [0, 0, 0, 1, 1, 2], [0], [0]>} : vector<1x8x8xf32>, vector<1x8x4xf32>, vector<1x8x4xf32> -> vector<1x8x4xf32>
    "tpu.trace_stop"() : () -> ()
    %47 = vector.shape_cast %46 : vector<1x8x4xf32> to vector<8x4xf32>
    %c0_30 = arith.constant 0 : index
    %c0_31 = arith.constant 0 : index
    %48 = vector.load %arg13[%c0_30, %c0_31] : memref<8x16xf32, #tpu.memory_space<vmem>>, vector<8x4xf32>
    tpu.vector_store %arg13[%c0_30, %c0_31], %47 {strides = array<i32>} : memref<8x16xf32, #tpu.memory_space<vmem>>, vector<8x4xf32>,
    %49 = vector.extract_strided_slice %22 {offsets = [0, 0, 4], sizes = [1, 8, 4], strides = [1, 1, 1]} : vector<1x8x16xf32> to vector<1x8x4xf32>
    %50 = vector.extract_strided_slice %23 {offsets = [0, 0, 4], sizes = [1, 8, 4], strides = [1, 1, 1]} : vector<1x8x16xf32> to vector<1x8x4xf32>
    "tpu.trace_start"() <{level = 10 : i32, message = "bnd,bmd->bnm"}> : () -> ()
    %cst_32 = arith.constant dense<0.000000e+00> : vector<1x8x8xf32>
    %51 = tpu.matmul %49, %50, %cst_32 {dimension_numbers = #tpu.dot_dimension_numbers<[2], [2], [1], [1], [0, 0, 0, 1, 1, 1], [0], [0]>} : vector<1x8x4xf32>, vector<1x8x4xf32>, vector<1x8x8xf32> -> vector<1x8x8xf32>
    "tpu.trace_stop"() : () -> ()
    %c1 = arith.constant 1 : index
    %c0_33 = arith.constant 0 : index
    %c0_34 = arith.constant 0 : index
    %52 = vector.load %arg10[%c1, %c0_33, %c0_34] : memref<4x8x8xf32, #tpu.memory_space<vmem>>, vector<1x8x8xf32>
    %53 = vector.shape_cast %52 : vector<1x8x8xf32> to vector<8x8xf32>
    %54 = vector.shape_cast %53 : vector<8x8xf32> to vector<1x8x8xf32>
    %55 = arith.addf %51, %54 : vector<1x8x8xf32>
    %56 = vector.broadcast %25 : vector<1x1x8xf32> to vector<1x8x8xf32>
    %57 = arith.addf %55, %56 : vector<1x8x8xf32>
    %cst_35 = arith.constant dense<0xFF800000> : vector<1x8xf32>
    %58 = vector.multi_reduction <maximumf>, %57, %cst_35 [2] : vector<1x8x8xf32> to vector<1x8xf32>
    %59 = vector.shape_cast %58 : vector<1x8xf32> to vector<1x8x1xf32>
    %60 = vector.broadcast %59 : vector<1x8x1xf32> to vector<1x8x8xf32>
    %61 = arith.subf %57, %60 : vector<1x8x8xf32>
    %62 = math.exp %61 : vector<1x8x8xf32>
    %cst_36 = arith.constant dense<0.000000e+00> : vector<1x8xf32>
    %63 = vector.multi_reduction <add>, %62, %cst_36 [2] : vector<1x8x8xf32> to vector<1x8xf32>
    %64 = vector.shape_cast %63 : vector<1x8xf32> to vector<1x8x1xf32>
    %65 = tpu.reciprocal %64 {approx = true} : vector<1x8x1xf32> -> vector<1x8x1xf32>
    %66 = vector.broadcast %65 : vector<1x8x1xf32> to vector<1x8x8xf32>
    %67 = arith.mulf %62, %66 : vector<1x8x8xf32>
    %68 = vector.extract_strided_slice %24 {offsets = [0, 0, 4], sizes = [1, 8, 4], strides = [1, 1, 1]} : vector<1x8x16xf32> to vector<1x8x4xf32>
    "tpu.trace_start"() <{level = 10 : i32, message = "bnm,bmd->bnd"}> : () -> ()
    %cst_37 = arith.constant dense<0.000000e+00> : vector<1x8x4xf32>
    %69 = tpu.matmul %67, %68, %cst_37 {dimension_numbers = #tpu.dot_dimension_numbers<[2], [1], [1], [2], [0, 0, 0, 1, 1, 2], [0], [0]>} : vector<1x8x8xf32>, vector<1x8x4xf32>, vector<1x8x4xf32> -> vector<1x8x4xf32>
    "tpu.trace_stop"() : () -> ()
    %70 = vector.shape_cast %69 : vector<1x8x4xf32> to vector<8x4xf32>
    %c0_38 = arith.constant 0 : index
    %c4 = arith.constant 4 : index
    %71 = vector.load %arg13[%c0_38, %c4] : memref<8x16xf32, #tpu.memory_space<vmem>>, vector<8x4xf32>
    tpu.vector_store %arg13[%c0_38, %c4], %70 {strides = array<i32>} : memref<8x16xf32, #tpu.memory_space<vmem>>, vector<8x4xf32>,
    %72 = vector.extract_strided_slice %22 {offsets = [0, 0, 8], sizes = [1, 8, 4], strides = [1, 1, 1]} : vector<1x8x16xf32> to vector<1x8x4xf32>
    %73 = vector.extract_strided_slice %23 {offsets = [0, 0, 8], sizes = [1, 8, 4], strides = [1, 1, 1]} : vector<1x8x16xf32> to vector<1x8x4xf32>
    "tpu.trace_start"() <{level = 10 : i32, message = "bnd,bmd->bnm"}> : () -> ()
    %cst_39 = arith.constant dense<0.000000e+00> : vector<1x8x8xf32>
    %74 = tpu.matmul %72, %73, %cst_39 {dimension_numbers = #tpu.dot_dimension_numbers<[2], [2], [1], [1], [0, 0, 0, 1, 1, 1], [0], [0]>} : vector<1x8x4xf32>, vector<1x8x4xf32>, vector<1x8x8xf32> -> vector<1x8x8xf32>
    "tpu.trace_stop"() : () -> ()
    %c2 = arith.constant 2 : index
    %c0_40 = arith.constant 0 : index
    %c0_41 = arith.constant 0 : index
    %75 = vector.load %arg10[%c2, %c0_40, %c0_41] : memref<4x8x8xf32, #tpu.memory_space<vmem>>, vector<1x8x8xf32>
    %76 = vector.shape_cast %75 : vector<1x8x8xf32> to vector<8x8xf32>
    %77 = vector.shape_cast %76 : vector<8x8xf32> to vector<1x8x8xf32>
    %78 = arith.addf %74, %77 : vector<1x8x8xf32>
    %79 = vector.broadcast %25 : vector<1x1x8xf32> to vector<1x8x8xf32>
    %80 = arith.addf %78, %79 : vector<1x8x8xf32>
    %cst_42 = arith.constant dense<0xFF800000> : vector<1x8xf32>
    %81 = vector.multi_reduction <maximumf>, %80, %cst_42 [2] : vector<1x8x8xf32> to vector<1x8xf32>
    %82 = vector.shape_cast %81 : vector<1x8xf32> to vector<1x8x1xf32>
    %83 = vector.broadcast %82 : vector<1x8x1xf32> to vector<1x8x8xf32>
    %84 = arith.subf %80, %83 : vector<1x8x8xf32>
    %85 = math.exp %84 : vector<1x8x8xf32>
    %cst_43 = arith.constant dense<0.000000e+00> : vector<1x8xf32>
    %86 = vector.multi_reduction <add>, %85, %cst_43 [2] : vector<1x8x8xf32> to vector<1x8xf32>
    %87 = vector.shape_cast %86 : vector<1x8xf32> to vector<1x8x1xf32>
    %88 = tpu.reciprocal %87 {approx = true} : vector<1x8x1xf32> -> vector<1x8x1xf32>
    %89 = vector.broadcast %88 : vector<1x8x1xf32> to vector<1x8x8xf32>
    %90 = arith.mulf %85, %89 : vector<1x8x8xf32>
    %91 = vector.extract_strided_slice %24 {offsets = [0, 0, 8], sizes = [1, 8, 4], strides = [1, 1, 1]} : vector<1x8x16xf32> to vector<1x8x4xf32>
    "tpu.trace_start"() <{level = 10 : i32, message = "bnm,bmd->bnd"}> : () -> ()
    %cst_44 = arith.constant dense<0.000000e+00> : vector<1x8x4xf32>
    %92 = tpu.matmul %90, %91, %cst_44 {dimension_numbers = #tpu.dot_dimension_numbers<[2], [1], [1], [2], [0, 0, 0, 1, 1, 2], [0], [0]>} : vector<1x8x8xf32>, vector<1x8x4xf32>, vector<1x8x4xf32> -> vector<1x8x4xf32>
    "tpu.trace_stop"() : () -> ()
    %93 = vector.shape_cast %92 : vector<1x8x4xf32> to vector<8x4xf32>
    %c0_45 = arith.constant 0 : index
    %c8 = arith.constant 8 : index
    %94 = vector.load %arg13[%c0_45, %c8] : memref<8x16xf32, #tpu.memory_space<vmem>>, vector<8x4xf32>
    tpu.vector_store %arg13[%c0_45, %c8], %93 {strides = array<i32>} : memref<8x16xf32, #tpu.memory_space<vmem>>, vector<8x4xf32>,
    %95 = vector.extract_strided_slice %22 {offsets = [0, 0, 12], sizes = [1, 8, 4], strides = [1, 1, 1]} : vector<1x8x16xf32> to vector<1x8x4xf32>
    %96 = vector.extract_strided_slice %23 {offsets = [0, 0, 12], sizes = [1, 8, 4], strides = [1, 1, 1]} : vector<1x8x16xf32> to vector<1x8x4xf32>
    "tpu.trace_start"() <{level = 10 : i32, message = "bnd,bmd->bnm"}> : () -> ()
    %cst_46 = arith.constant dense<0.000000e+00> : vector<1x8x8xf32>
    %97 = tpu.matmul %95, %96, %cst_46 {dimension_numbers = #tpu.dot_dimension_numbers<[2], [2], [1], [1], [0, 0, 0, 1, 1, 1], [0], [0]>} : vector<1x8x4xf32>, vector<1x8x4xf32>, vector<1x8x8xf32> -> vector<1x8x8xf32>
    "tpu.trace_stop"() : () -> ()
    %c3 = arith.constant 3 : index
    %c0_47 = arith.constant 0 : index
    %c0_48 = arith.constant 0 : index
    %98 = vector.load %arg10[%c3, %c0_47, %c0_48] : memref<4x8x8xf32, #tpu.memory_space<vmem>>, vector<1x8x8xf32>
    %99 = vector.shape_cast %98 : vector<1x8x8xf32> to vector<8x8xf32>
    %100 = vector.shape_cast %99 : vector<8x8xf32> to vector<1x8x8xf32>
    %101 = arith.addf %97, %100 : vector<1x8x8xf32>
    %102 = vector.broadcast %25 : vector<1x1x8xf32> to vector<1x8x8xf32>
    %103 = arith.addf %101, %102 : vector<1x8x8xf32>
    %cst_49 = arith.constant dense<0xFF800000> : vector<1x8xf32>
    %104 = vector.multi_reduction <maximumf>, %103, %cst_49 [2] : vector<1x8x8xf32> to vector<1x8xf32>
    %105 = vector.shape_cast %104 : vector<1x8xf32> to vector<1x8x1xf32>
    %106 = vector.broadcast %105 : vector<1x8x1xf32> to vector<1x8x8xf32>
    %107 = arith.subf %103, %106 : vector<1x8x8xf32>
    %108 = math.exp %107 : vector<1x8x8xf32>
    %cst_50 = arith.constant dense<0.000000e+00> : vector<1x8xf32>
    %109 = vector.multi_reduction <add>, %108, %cst_50 [2] : vector<1x8x8xf32> to vector<1x8xf32>
    %110 = vector.shape_cast %109 : vector<1x8xf32> to vector<1x8x1xf32>
    %111 = tpu.reciprocal %110 {approx = true} : vector<1x8x1xf32> -> vector<1x8x1xf32>
    %112 = vector.broadcast %111 : vector<1x8x1xf32> to vector<1x8x8xf32>
    %113 = arith.mulf %108, %112 : vector<1x8x8xf32>
    %114 = vector.extract_strided_slice %24 {offsets = [0, 0, 12], sizes = [1, 8, 4], strides = [1, 1, 1]} : vector<1x8x16xf32> to vector<1x8x4xf32>
    "tpu.trace_start"() <{level = 10 : i32, message = "bnm,bmd->bnd"}> : () -> ()
    %cst_51 = arith.constant dense<0.000000e+00> : vector<1x8x4xf32>
    %115 = tpu.matmul %113, %114, %cst_51 {dimension_numbers = #tpu.dot_dimension_numbers<[2], [1], [1], [2], [0, 0, 0, 1, 1, 2], [0], [0]>} : vector<1x8x8xf32>, vector<1x8x4xf32>, vector<1x8x4xf32> -> vector<1x8x4xf32>
    "tpu.trace_stop"() : () -> ()
    %116 = vector.shape_cast %115 : vector<1x8x4xf32> to vector<8x4xf32>
    %c0_52 = arith.constant 0 : index
    %c12 = arith.constant 12 : index
    %117 = vector.load %arg13[%c0_52, %c12] : memref<8x16xf32, #tpu.memory_space<vmem>>, vector<8x4xf32>
    tpu.vector_store %arg13[%c0_52, %c12], %116 {strides = array<i32>} : memref<8x16xf32, #tpu.memory_space<vmem>>, vector<8x4xf32>,
    %c0_53 = arith.constant 0 : index
    %c0_54 = arith.constant 0 : index
    %118 = vector.load %arg14[%c0_53, %c0_54] : memref<8x32xf32, #tpu.memory_space<vmem>>, vector<8x32xf32>
    %c0_55 = arith.constant 0 : index
    %c0_56 = arith.constant 0 : index
    %119 = vector.load %arg13[%c0_55, %c0_56] : memref<8x16xf32, #tpu.memory_space<vmem>>, vector<8x16xf32>
    %c0_57 = arith.constant 0 : index
    %c0_58 = arith.constant 0 : index
    %c0_59 = arith.constant 0 : index
    %120 = vector.load %arg8[%c0_57, %c0_58, %c0_59] : memref<1x16x32xf32, #tpu.memory_space<vmem>>, vector<1x16x32xf32>
    %121 = vector.shape_cast %120 : vector<1x16x32xf32> to vector<16x32xf32>
    %cst_60 = arith.constant dense<0.000000e+00> : vector<8x32xf32>
    %122 = tpu.matmul %119, %121, %cst_60 {dimension_numbers = #tpu.dot_dimension_numbers<[1], [0], [0], [1], [0, 0, 1, 1], [], []>} : vector<8x16xf32>, vector<16x32xf32>, vector<8x32xf32> -> vector<8x32xf32>
    %123 = arith.addf %118, %122 : vector<8x32xf32>
    %c0_61 = arith.constant 0 : index
    %c0_62 = arith.constant 0 : index
    %124 = vector.load %arg14[%c0_61, %c0_62] : memref<8x32xf32, #tpu.memory_space<vmem>>, vector<8x32xf32>
    tpu.vector_store %arg14[%c0_61, %c0_62], %123 {strides = array<i32>} : memref<8x32xf32, #tpu.memory_space<vmem>>, vector<8x32xf32>,
    %c1_i32 = arith.constant 1 : i32
    %125 = arith.cmpi eq, %arg1, %c1_i32 : i32
    %126 = arith.extui %125 : i1 to i32
    %c0_i32_63 = arith.constant 0 : i32
    %127 = arith.cmpi ne, %126, %c0_i32_63 : i32
    scf.if %127 {
      %c0_64 = arith.constant 0 : index
      %c0_65 = arith.constant 0 : index
      %128 = vector.load %arg14[%c0_64, %c0_65] : memref<8x32xf32, #tpu.memory_space<vmem>>, vector<8x32xf32>
      %c0_66 = arith.constant 0 : index
      %c0_67 = arith.constant 0 : index
      %129 = vector.load %arg9[%c0_66, %c0_67] : memref<1x32xf32, #tpu.memory_space<vmem>>, vector<1x32xf32>
      %130 = vector.broadcast %129 : vector<1x32xf32> to vector<8x32xf32>
      %131 = arith.addf %128, %130 : vector<8x32xf32>
      %132 = vector.shape_cast %131 : vector<8x32xf32> to vector<1x8x32xf32>
      %c0_68 = arith.constant 0 : index
      %c0_69 = arith.constant 0 : index
      %c0_70 = arith.constant 0 : index
      %133 = vector.load %arg12[%c0_68, %c0_69, %c0_70] : memref<1x8x32xf32, #tpu.memory_space<vmem>>, vector<1x8x32xf32>
      tpu.vector_store %arg12[%c0_68, %c0_69, %c0_70], %132 {strides = array<i32>} : memref<1x8x32xf32, #tpu.memory_space<vmem>>, vector<1x8x32xf32>,
    } else {
    }
    return
  }
  func.func @transform_0(%arg0: i32, %arg1: i32) -> (i32, i32, i32) {
    %c0_i32 = arith.constant 0 : i32
    %c0_i32_0 = arith.constant 0 : i32
    %c0_i32_1 = arith.constant 0 : i32
    return %arg0, %c0_i32, %c0_i32_0 : i32, i32, i32
  }
  func.func @transform_1(%arg0: i32, %arg1: i32) -> (i32, i32, i32) {
    %c0_i32 = arith.constant 0 : i32
    %c0_i32_0 = arith.constant 0 : i32
    %c0_i32_1 = arith.constant 0 : i32
    return %arg1, %c0_i32, %c0_i32_0 : i32, i32, i32
  }
  func.func @transform_2(%arg0: i32, %arg1: i32) -> (i32, i32, i32) {
    %c0_i32 = arith.constant 0 : i32
    %c0_i32_0 = arith.constant 0 : i32
    %c0_i32_1 = arith.constant 0 : i32
    return %arg1, %c0_i32, %c0_i32_0 : i32, i32, i32
  }
  func.func @transform_3(%arg0: i32, %arg1: i32) -> (i32, i32, i32) {
    %c0_i32 = arith.constant 0 : i32
    %c0_i32_0 = arith.constant 0 : i32
    %c0_i32_1 = arith.constant 0 : i32
    return %arg1, %c0_i32, %c0_i32_0 : i32, i32, i32
  }
  func.func @transform_4(%arg0: i32, %arg1: i32) -> (i32, i32, i32) {
    %c0_i32 = arith.constant 0 : i32
    %c0_i32_0 = arith.constant 0 : i32
    %c0_i32_1 = arith.constant 0 : i32
    return %arg1, %c0_i32, %c0_i32_0 : i32, i32, i32
  }
  func.func @transform_5(%arg0: i32, %arg1: i32) -> (i32, i32, i32) {
    %c0_i32 = arith.constant 0 : i32
    %c0_i32_0 = arith.constant 0 : i32
    %c0_i32_1 = arith.constant 0 : i32
    return %arg1, %c0_i32, %c0_i32_0 : i32, i32, i32
  }
  func.func @transform_6(%arg0: i32, %arg1: i32) -> (i32, i32, i32) {
    %c0_i32 = arith.constant 0 : i32
    %c0_i32_0 = arith.constant 0 : i32
    %c0_i32_1 = arith.constant 0 : i32
    return %arg1, %c0_i32, %c0_i32_0 : i32, i32, i32
  }
  func.func @transform_7(%arg0: i32, %arg1: i32) -> (i32, i32) {
    %c0_i32 = arith.constant 0 : i32
    %c0_i32_0 = arith.constant 0 : i32
    %c0_i32_1 = arith.constant 0 : i32
    return %c0_i32, %c0_i32_0 : i32, i32
  }
  func.func @transform_8(%arg0: i32, %arg1: i32) -> (i32, i32, i32) {
    %c0_i32 = arith.constant 0 : i32
    %c0_i32_0 = arith.constant 0 : i32
    %c0_i32_1 = arith.constant 0 : i32
    return %arg1, %c0_i32, %c0_i32_0 : i32, i32, i32
  }
  func.func @transform_9(%arg0: i32, %arg1: i32) -> (i32, i32, i32) {
    %c0_i32 = arith.constant 0 : i32
    %c0_i32_0 = arith.constant 0 : i32
    %c0_i32_1 = arith.constant 0 : i32
    return %arg0, %c0_i32, %c0_i32_0 : i32, i32, i32
  }
  func.func @transform_10(%arg0: i32, %arg1: i32) -> (i32, i32, i32) {
    %c0_i32 = arith.constant 0 : i32
    %c0_i32_0 = arith.constant 0 : i32
    %c0_i32_1 = arith.constant 0 : i32
    return %arg0, %c0_i32, %c0_i32_0 : i32, i32, i32
  }
}

</mosaic_0001>

<llo_original>
// kernel: tpu_custom_call.1
$region0: #{tpu_custom_call.1}
  #allocation0 [shape = 'u32[]', space=smem, size = 0x4, offset = 0x4, fixed_abs, tag = 'smem constant byte address 0x4 - core index']
  #allocation1 [shape = 'u32[144,128]{1,0:T(1,128)}', space=vmem, size = 0x12000, scoped, tag = 'internal scratch']
  #allocation2 [shape = 'f32[8,16]{1,0:T(8,128)}', space=vmem, size = 0x1000, scoped, tag = 'scratch operand']
  #allocation3 [shape = 'f32[8,32]{1,0:T(8,128)}', space=vmem, size = 0x1000, scoped, tag = 'scratch operand']
  %s0 = inlined_call_operand.vmem [shape: f32[2,8,32], index: 0, kind: input, shape index: {}]
  %s1 = inlined_call_operand.vmem [shape: f32[2,32,16], index: 1, kind: input, shape index: {}]
  %s2 = inlined_call_operand.vmem [shape: f32[2,32,16], index: 2, kind: input, shape index: {}]
  %s3 = inlined_call_operand.vmem [shape: f32[2,32,16], index: 3, kind: input, shape index: {}]
  %s4 = inlined_call_operand.vmem [shape: f32[2,1,16], index: 4, kind: input, shape index: {}]
  %s5 = inlined_call_operand.vmem [shape: f32[2,1,16], index: 5, kind: input, shape index: {}]
  %s6 = inlined_call_operand.vmem [shape: f32[2,16,32], index: 6, kind: input, shape index: {}]
  %s7 = inlined_call_operand.vmem [shape: f32[1,32], index: 7, kind: input, shape index: {}]
  %s8 = inlined_call_operand.vmem [shape: f32[8,8,8], index: 8, kind: input, shape index: {}]
  %s9 = inlined_call_operand.vmem [shape: f32[2,1,8], index: 9, kind: input, shape index: {}]
  %s10 = inlined_call_operand.hbm [shape: f32[2,8,32], index: 10, kind: output, shape index: {}]
  %s11 = sld [smem:[#allocation0]]
  $region81: #{tpu_custom_call.1} parent=0
    _
  %s13 = ssub.s32 1, %s11
  %s14 = scalar_select 0, %s13, %s11
  $region1: #{tpu_custom_call.1} parent=0
    #allocation4 [shape = 'u8[8192]{0}', space=vmem, size = 0x2000, scoped, tag = 'output window, operand 0']
    #allocation5 [shape = 's32[2]{0}', space=sflag, size = 0x8, scoped, tag = 'scoped memory for tpu_custom_call.1']
    %15 = vsyncpa [#allocation5], 0
    %s16 = scalar_lea.sflag [#allocation5], 1
    %17 = vsyncpa %s16, 0
    loop: start=0, step=1, limit=6
    $region2: #{tpu_custom_call.1} parent=1 // loop_pre_header
      _
    $region3: #{tpu_custom_call.1} parent=1 // loop_header
      %s19 = sphi 0, %s23
      %p20 = scmp.ge.s32.totalorder %s19, 6
      %s26 = sphi 0, %s38
      %s27 = sphi 0, %s34
      %s28 = sphi 0, %s26
      %s29 = sphi 0, %s27
      %s30 = sphi 0, %s28
      %s31 = sphi 0, %s29
      %s41 = sphi 0, %s43
      %s44 = sphi 0, %s41
      %s45 = sphi 0, %s44
      %s61 = sphi 0, %s45
      %s67 = sphi 0, %s69
      %s70 = sphi 0, %s67
      %s71 = sphi 0, %s70
      %s87 = sphi 0, %s71
      %s93 = sphi 0, %s95
      %s96 = sphi 0, %s93
      %s97 = sphi 0, %s96
      %s113 = sphi 0, %s97
      %s119 = sphi 0, %s121
      %s122 = sphi 0, %s119
      %s123 = sphi 0, %s122
      %s139 = sphi 0, %s123
      %s145 = sphi 0, %s147
      %s148 = sphi 0, %s145
      %s149 = sphi 0, %s148
      %s165 = sphi 0, %s149
      %s171 = sphi 0, %s173
      %s174 = sphi 0, %s171
      %s175 = sphi 0, %s174
      %s191 = sphi 0, %s175
      %s197 = sphi 0, %s199
      %s200 = sphi 0, %s197
      %s201 = sphi 0, %s200
      %s217 = sphi 0, %s201
      %s221 = sphi 0, %s221
      %s223 = sphi 0, %s221
      %s224 = sphi 0, %s223
      %s238 = sphi 0, %s224
      %s244 = sphi 0, %s246
      %s247 = sphi 0, %s244
      %s248 = sphi 0, %s247
      %s264 = sphi 0, %s248
      %s270 = sphi 0, %s272
      %s273 = sphi 0, %s270
      %s274 = sphi 0, %s273
      %s290 = sphi 0, %s274
      %s296 = sphi 0, %s298
      %s299 = sphi 0, %s296
      %s300 = sphi 0, %s299
      %s316 = sphi 0, %s300
    $region4: #{tpu_custom_call.1} parent=1 // loop_header_branch
      %22 = sbr.rel (%p20) target = $region8
    $region5: #{tpu_custom_call.1} parent=1 // loop_body
      %s24 = ssub.s32 %s19, 1
      %s25 = ssub.s32 %s19, 2
      %s32 = sadd.s32 1, %s27
      %p33 = scmp.ge.s32.totalorder %s32, 2
      %s34 = scalar_select %p33, 0, %s32
      %s35 = sadd.s32 1, %s26
      %s36 = scalar_select %p33, %s35, %s26
      %p37 = scmp.ge.s32.totalorder %s36, 2
      %s38 = scalar_select %p37, 0, %s36
      %s39 = ssub.s32 %s26, %s38
      %p40 = scmp.eq.s32.totalorder %s39, 0
      %s42 = sadd.s32 %s41, 1
      %s43 = scalar_select %p40, %s41, %s42
      %p46 = pneg %p40
      %p47 = scmp.eq.s32.totalorder %s19, 3
      %p48 = por %p46, %p47
      %p49 = scmp.ne.s32.totalorder %s41, %s44
      %p50 = scmp.eq.s32.totalorder %s19, 0
      %p51 = por %p49, %p50
      %p52 = scmp.ne.s32.totalorder %s41, %s44
      %p53 = scmp.eq.s32.totalorder %s24, 3
      %p54 = por %p52, %p53
      %p55 = scmp.ne.s32.totalorder %s44, %s45
      %p56 = scmp.eq.s32.totalorder %s24, 0
      %p57 = por %p55, %p56
      %p58 = scmp.ne.s32.totalorder %s44, %s45
      %p59 = scmp.eq.s32.totalorder %s25, 3
      %p60 = por %p58, %p59
      %p62 = scmp.ne.s32.totalorder %s45, %s61
      %p63 = scmp.eq.s32.totalorder %s25, 0
      %p64 = por %p62, %p63
      %s65 = ssub.s32 %s27, %s34
      %p66 = scmp.eq.s32.totalorder %s65, 0
      %s68 = sadd.s32 %s67, 1
      %s69 = scalar_select %p66, %s67, %s68
      %p72 = pneg %p66
      %p73 = scmp.eq.s32.totalorder %s19, 3
      %p74 = por %p72, %p73
      %p75 = scmp.ne.s32.totalorder %s67, %s70
      %p76 = scmp.eq.s32.totalorder %s19, 0
      %p77 = por %p75, %p76
      %p78 = scmp.ne.s32.totalorder %s67, %s70
      %p79 = scmp.eq.s32.totalorder %s24, 3
      %p80 = por %p78, %p79
      %p81 = scmp.ne.s32.totalorder %s70, %s71
      %p82 = scmp.eq.s32.totalorder %s24, 0
      %p83 = por %p81, %p82
      %p84 = scmp.ne.s32.totalorder %s70, %s71
      %p85 = scmp.eq.s32.totalorder %s25, 3
      %p86 = por %p84, %p85
      %p88 = scmp.ne.s32.totalorder %s71, %s87
      %p89 = scmp.eq.s32.totalorder %s25, 0
      %p90 = por %p88, %p89
      %s91 = ssub.s32 %s27, %s34
      %p92 = scmp.eq.s32.totalorder %s91, 0
      %s94 = sadd.s32 %s93, 1
      %s95 = scalar_select %p92, %s93, %s94
      %p98 = pneg %p92
      %p99 = scmp.eq.s32.totalorder %s19, 3
      %p100 = por %p98, %p99
      %p101 = scmp.ne.s32.totalorder %s93, %s96
      %p102 = scmp.eq.s32.totalorder %s19, 0
      %p103 = por %p101, %p102
      %p104 = scmp.ne.s32.totalorder %s93, %s96
      %p105 = scmp.eq.s32.totalorder %s24, 3
      %p106 = por %p104, %p105
      %p107 = scmp.ne.s32.totalorder %s96, %s97
      %p108 = scmp.eq.s32.totalorder %s24, 0
      %p109 = por %p107, %p108
      %p110 = scmp.ne.s32.totalorder %s96, %s97
      %p111 = scmp.eq.s32.totalorder %s25, 3
      %p112 = por %p110, %p111
      %p114 = scmp.ne.s32.totalorder %s97, %s113
      %p115 = scmp.eq.s32.totalorder %s25, 0
      %p116 = por %p114, %p115
      %s117 = ssub.s32 %s27, %s34
      %p118 = scmp.eq.s32.totalorder %s117, 0
      %s120 = sadd.s32 %s119, 1
      %s121 = scalar_select %p118, %s119, %s120
      %p124 = pneg %p118
      %p125 = scmp.eq.s32.totalorder %s19, 3
      %p126 = por %p124, %p125
      %p127 = scmp.ne.s32.totalorder %s119, %s122
      %p128 = scmp.eq.s32.totalorder %s19, 0
      %p129 = por %p127, %p128
      %p130 = scmp.ne.s32.totalorder %s119, %s122
      %p131 = scmp.eq.s32.totalorder %s24, 3
      %p132 = por %p130, %p131
      %p133 = scmp.ne.s32.totalorder %s122, %s123
      %p134 = scmp.eq.s32.totalorder %s24, 0
      %p135 = por %p133, %p134
      %p136 = scmp.ne.s32.totalorder %s122, %s123
      %p137 = scmp.eq.s32.totalorder %s25, 3
      %p138 = por %p136, %p137
      %p140 = scmp.ne.s32.totalorder %s123, %s139
      %p141 = scmp.eq.s32.totalorder %s25, 0
      %p142 = por %p140, %p141
      %s143 = ssub.s32 %s27, %s34
      %p144 = scmp.eq.s32.totalorder %s143, 0
      %s146 = sadd.s32 %s145, 1
      %s147 = scalar_select %p144, %s145, %s146
      %p150 = pneg %p144
      %p151 = scmp.eq.s32.totalorder %s19, 3
      %p152 = por %p150, %p151
      %p153 = scmp.ne.s32.totalorder %s145, %s148
      %p154 = scmp.eq.s32.totalorder %s19, 0
      %p155 = por %p153, %p154
      %p156 = scmp.ne.s32.totalorder %s145, %s148
      %p157 = scmp.eq.s32.totalorder %s24, 3
      %p158 = por %p156, %p157
      %p159 = scmp.ne.s32.totalorder %s148, %s149
      %p160 = scmp.eq.s32.totalorder %s24, 0
      %p161 = por %p159, %p160
      %p162 = scmp.ne.s32.totalorder %s148, %s149
      %p163 = scmp.eq.s32.totalorder %s25, 3
      %p164 = por %p162, %p163
      %p166 = scmp.ne.s32.totalorder %s149, %s165
      %p167 = scmp.eq.s32.totalorder %s25, 0
      %p168 = por %p166, %p167
      %s169 = ssub.s32 %s27, %s34
      %p170 = scmp.eq.s32.totalorder %s169, 0
      %s172 = sadd.s32 %s171, 1
      %s173 = scalar_select %p170, %s171, %s172
      %p176 = pneg %p170
      %p177 = scmp.eq.s32.totalorder %s19, 3
      %p178 = por %p176, %p177
      %p179 = scmp.ne.s32.totalorder %s171, %s174
      %p180 = scmp.eq.s32.totalorder %s19, 0
      %p181 = por %p179, %p180
      %p182 = scmp.ne.s32.totalorder %s171, %s174
      %p183 = scmp.eq.s32.totalorder %s24, 3
      %p184 = por %p182, %p183
      %p185 = scmp.ne.s32.totalorder %s174, %s175
      %p186 = scmp.eq.s32.totalorder %s24, 0
      %p187 = por %p185, %p186
      %p188 = scmp.ne.s32.totalorder %s174, %s175
      %p189 = scmp.eq.s32.totalorder %s25, 3
      %p190 = por %p188, %p189
      %p192 = scmp.ne.s32.totalorder %s175, %s191
      %p193 = scmp.eq.s32.totalorder %s25, 0
      %p194 = por %p192, %p193
      %s195 = ssub.s32 %s27, %s34
      %p196 = scmp.eq.s32.totalorder %s195, 0
      %s198 = sadd.s32 %s197, 1
      %s199 = scalar_select %p196, %s197, %s198
      %p202 = pneg %p196
      %p203 = scmp.eq.s32.totalorder %s19, 3
      %p204 = por %p202, %p203
      %p205 = scmp.ne.s32.totalorder %s197, %s200
      %p206 = scmp.eq.s32.totalorder %s19, 0
      %p207 = por %p205, %p206
      %p208 = scmp.ne.s32.totalorder %s197, %s200
      %p209 = scmp.eq.s32.totalorder %s24, 3
      %p210 = por %p208, %p209
      %p211 = scmp.ne.s32.totalorder %s200, %s201
      %p212 = scmp.eq.s32.totalorder %s24, 0
      %p213 = por %p211, %p212
      %p214 = scmp.ne.s32.totalorder %s200, %s201
      %p215 = scmp.eq.s32.totalorder %s25, 3
      %p216 = por %p214, %p215
      %p218 = scmp.ne.s32.totalorder %s201, %s217
      %p219 = scmp.eq.s32.totalorder %s25, 0
      %p220 = por %p218, %p219
      %s222 = sadd.s32 %s221, 1
      %p225 = scmp.eq.s32.totalorder %s19, 3
      %p226 = scmp.ne.s32.totalorder %s221, %s223
      %p227 = scmp.eq.s32.totalorder %s19, 0
      %p228 = por %p226, %p227
      %p229 = scmp.ne.s32.totalorder %s221, %s223
      %p230 = scmp.eq.s32.totalorder %s24, 3
      %p231 = por %p229, %p230
      %p232 = scmp.ne.s32.totalorder %s223, %s224
      %p233 = scmp.eq.s32.totalorder %s24, 0
      %p234 = por %p232, %p233
      %p235 = scmp.ne.s32.totalorder %s223, %s224
      %p236 = scmp.eq.s32.totalorder %s25, 3
      %p237 = por %p235, %p236
      %p239 = scmp.ne.s32.totalorder %s224, %s238
      %p240 = scmp.eq.s32.totalorder %s25, 0
      %p241 = por %p239, %p240
      %s242 = ssub.s32 %s27, %s34
      %p243 = scmp.eq.s32.totalorder %s242, 0
      %s245 = sadd.s32 %s244, 1
      %s246 = scalar_select %p243, %s244, %s245
      %p249 = pneg %p243
      %p250 = scmp.eq.s32.totalorder %s19, 3
      %p251 = por %p249, %p250
      %p252 = scmp.ne.s32.totalorder %s244, %s247
      %p253 = scmp.eq.s32.totalorder %s19, 0
      %p254 = por %p252, %p253
      %p255 = scmp.ne.s32.totalorder %s244, %s247
      %p256 = scmp.eq.s32.totalorder %s24, 3
      %p257 = por %p255, %p256
      %p258 = scmp.ne.s32.totalorder %s247, %s248
      %p259 = scmp.eq.s32.totalorder %s24, 0
      %p260 = por %p258, %p259
      %p261 = scmp.ne.s32.totalorder %s247, %s248
      %p262 = scmp.eq.s32.totalorder %s25, 3
      %p263 = por %p261, %p262
      %p265 = scmp.ne.s32.totalorder %s248, %s264
      %p266 = scmp.eq.s32.totalorder %s25, 0
      %p267 = por %p265, %p266
      %s268 = ssub.s32 %s26, %s38
      %p269 = scmp.eq.s32.totalorder %s268, 0
      %s271 = sadd.s32 %s270, 1
      %s272 = scalar_select %p269, %s270, %s271
      %p275 = pneg %p269
      %p276 = scmp.eq.s32.totalorder %s19, 3
      %p277 = por %p275, %p276
      %p278 = scmp.ne.s32.totalorder %s270, %s273
      %p279 = scmp.eq.s32.totalorder %s19, 0
      %p280 = por %p278, %p279
      %p281 = scmp.ne.s32.totalorder %s270, %s273
      %p282 = scmp.eq.s32.totalorder %s24, 3
      %p283 = por %p281, %p282
      %p284 = scmp.ne.s32.totalorder %s273, %s274
      %p285 = scmp.eq.s32.totalorder %s24, 0
      %p286 = por %p284, %p285
      %p287 = scmp.ne.s32.totalorder %s273, %s274
      %p288 = scmp.eq.s32.totalorder %s25, 3
      %p289 = por %p287, %p288
      %p291 = scmp.ne.s32.totalorder %s274, %s290
      %p292 = scmp.eq.s32.totalorder %s25, 0
      %p293 = por %p291, %p292
      %s294 = ssub.s32 %s26, %s38
      %p295 = scmp.eq.s32.totalorder %s294, 0
      %s297 = sadd.s32 %s296, 1
      %s298 = scalar_select %p295, %s296, %s297
      %p301 = pneg %p295
      %p302 = scmp.eq.s32.totalorder %s19, 3
      %p303 = por %p301, %p302
      %p304 = scmp.ne.s32.totalorder %s296, %s299
      %p305 = scmp.eq.s32.totalorder %s19, 0
      %p306 = por %p304, %p305
      %p307 = scmp.ne.s32.totalorder %s296, %s299
      %p308 = scmp.eq.s32.totalorder %s24, 3
      %p309 = por %p307, %p308
      %p310 = scmp.ne.s32.totalorder %s299, %s300
      %p311 = scmp.eq.s32.totalorder %s24, 0
      %p312 = por %p310, %p311
      %p313 = scmp.ne.s32.totalorder %s299, %s300
      %p314 = scmp.eq.s32.totalorder %s25, 3
      %p315 = por %p313, %p314
      %p317 = scmp.ne.s32.totalorder %s300, %s316
      %p318 = scmp.eq.s32.totalorder %s25, 0
      %p319 = por %p317, %p318
      %p320 = scmp.le.s32.totalorder 1, %s19
      %p321 = scmp.lt.s32.totalorder %s19, 5
      %p322 = pnand %p320, %p321
      %p323 = pneg %p322
      // Predicated region
      $region9: #{tpu_custom_call.1} parent=5 // pred_check
        _
      $region10: #{tpu_custom_call.1} parent=5 // pred_check_branch
        %325 = sbr.rel (%p322) target = $region12
      $region11: #{tpu_custom_call.1} parent=5 // pred_region
        %s326 = ssub.s32 %s19, 1
        // Predicated region
        $region13: #{tpu_custom_call.1} parent=11 // pred_check
          %p327 = pneg %p234
        $region14: #{tpu_custom_call.1} parent=11 // pred_check_branch
          %329 = sbr.rel (%p327) target = $region16
        $region15: #{tpu_custom_call.1} parent=11 // pred_region
          _
        $region16: #{tpu_custom_call.1} parent=11 // pred_fallthru
          _
      $region12: #{tpu_custom_call.1} parent=5 // pred_fallthru
        _
      %p330 = scmp.lt.s32.totalorder %s19, 4
      // Predicated region
      $region17: #{tpu_custom_call.1} parent=5 // pred_check
        %p331 = pneg %p330
      $region18: #{tpu_custom_call.1} parent=5 // pred_check_branch
        %333 = sbr.rel (%p331) target = $region20
      $region19: #{tpu_custom_call.1} parent=5 // pred_region
        // Predicated region
        $region21: #{tpu_custom_call.1} parent=19 // pred_check
          %p334 = pneg %p51
        $region22: #{tpu_custom_call.1} parent=19 // pred_check_branch
          %336 = sbr.rel (%p334) target = $region24
        $region23: #{tpu_custom_call.1} parent=19 // pred_region
          %p337 = scmp.lt.s32.totalorder %s26, 1
          %s338 = scalar_select %p337, %s26, 1
          %s339 = smul.addr %s338, 8
          %s340 = scalar_lea.vmem %s0, %s339
        $region24: #{tpu_custom_call.1} parent=19 // pred_fallthru
          _
        // Predicated region
        $region25: #{tpu_custom_call.1} parent=19 // pred_check
          %p341 = pneg %p77
        $region26: #{tpu_custom_call.1} parent=19 // pred_check_branch
          %343 = sbr.rel (%p341) target = $region28
        $region27: #{tpu_custom_call.1} parent=19 // pred_region
          %p344 = scmp.lt.s32.totalorder %s27, 1
          %s345 = scalar_select %p344, %s27, 1
          %s346 = smul.addr %s345, 4
          %s347 = smul.addr %s346, 8
          %s348 = scalar_lea.vmem %s1, %s347
        $region28: #{tpu_custom_call.1} parent=19 // pred_fallthru
          _
        // Predicated region
        $region29: #{tpu_custom_call.1} parent=19 // pred_check
          %p349 = pneg %p103
        $region30: #{tpu_custom_call.1} parent=19 // pred_check_branch
          %351 = sbr.rel (%p349) target = $region32
        $region31: #{tpu_custom_call.1} parent=19 // pred_region
          %p352 = scmp.lt.s32.totalorder %s27, 1
          %s353 = scalar_select %p352, %s27, 1
          %s354 = smul.addr %s353, 4
          %s355 = smul.addr %s354, 8
          %s356 = scalar_lea.vmem %s2, %s355
        $region32: #{tpu_custom_call.1} parent=19 // pred_fallthru
          _
        // Predicated region
        $region33: #{tpu_custom_call.1} parent=19 // pred_check
          %p357 = pneg %p129
        $region34: #{tpu_custom_call.1} parent=19 // pred_check_branch
          %359 = sbr.rel (%p357) target = $region36
        $region35: #{tpu_custom_call.1} parent=19 // pred_region
          %p360 = scmp.lt.s32.totalorder %s27, 1
          %s361 = scalar_select %p360, %s27, 1
          %s362 = smul.addr %s361, 4
          %s363 = smul.addr %s362, 8
          %s364 = scalar_lea.vmem %s3, %s363
        $region36: #{tpu_custom_call.1} parent=19 // pred_fallthru
          _
        // Predicated region
        $region37: #{tpu_custom_call.1} parent=19 // pred_check
          %p365 = pneg %p155
        $region38: #{tpu_custom_call.1} parent=19 // pred_check_branch
          %367 = sbr.rel (%p365) target = $region40
        $region39: #{tpu_custom_call.1} parent=19 // pred_region
          %p368 = scmp.lt.s32.totalorder %s27, 1
          %s369 = scalar_select %p368, %s27, 1
          %s370 = scalar_lea.vmem %s4, %s369
        $region40: #{tpu_custom_call.1} parent=19 // pred_fallthru
          _
        // Predicated region
        $region41: #{tpu_custom_call.1} parent=19 // pred_check
          %p371 = pneg %p181
        $region42: #{tpu_custom_call.1} parent=19 // pred_check_branch
          %373 = sbr.rel (%p371) target = $region44
        $region43: #{tpu_custom_call.1} parent=19 // pred_region
          %p374 = scmp.lt.s32.totalorder %s27, 1
          %s375 = scalar_select %p374, %s27, 1
          %s376 = scalar_lea.vmem %s5, %s375
        $region44: #{tpu_custom_call.1} parent=19 // pred_fallthru
          _
        // Predicated region
        $region45: #{tpu_custom_call.1} parent=19 // pred_check
          %p377 = pneg %p207
        $region46: #{tpu_custom_call.1} parent=19 // pred_check_branch
          %379 = sbr.rel (%p377) target = $region48
        $region47: #{tpu_custom_call.1} parent=19 // pred_region
          %p380 = scmp.lt.s32.totalorder %s27, 1
          %s381 = scalar_select %p380, %s27, 1
          %s382 = smul.addr %s381, 2
          %s383 = smul.addr %s382, 8
          %s384 = scalar_lea.vmem %s6, %s383
        $region48: #{tpu_custom_call.1} parent=19 // pred_fallthru
          _
        // Predicated region
        $region49: #{tpu_custom_call.1} parent=19 // pred_check
          %p385 = pneg %p254
        $region50: #{tpu_custom_call.1} parent=19 // pred_check_branch
          %387 = sbr.rel (%p385) target = $region52
        $region51: #{tpu_custom_call.1} parent=19 // pred_region
          %s388 = smul.u32 4, %s27
          %p389 = scmp.lt.s32.totalorder %s388, 7
          %s390 = scalar_select %p389, %s388, 7
          %s391 = smul.addr %s390, 8
          %s392 = scalar_lea.vmem %s8, %s391
          %s393 = smul.u32 4, %s27
        $region52: #{tpu_custom_call.1} parent=19 // pred_fallthru
          _
        // Predicated region
        $region53: #{tpu_custom_call.1} parent=19 // pred_check
          %p394 = pneg %p280
        $region54: #{tpu_custom_call.1} parent=19 // pred_check_branch
          %396 = sbr.rel (%p394) target = $region56
        $region55: #{tpu_custom_call.1} parent=19 // pred_region
          %p397 = scmp.lt.s32.totalorder %s26, 1
          %s398 = scalar_select %p397, %s26, 1
          %s399 = scalar_lea.vmem %s9, %s398
        $region56: #{tpu_custom_call.1} parent=19 // pred_fallthru
          _
      $region20: #{tpu_custom_call.1} parent=5 // pred_fallthru
        _
      %p400 = scmp.le.s32.totalorder 1, %s19
      %p401 = scmp.lt.s32.totalorder %s19, 5
      %p402 = pnand %p400, %p401
      %p403 = pneg %p402
      // Predicated region
      $region57: #{tpu_custom_call.1} parent=5 // pred_check
        _
      $region58: #{tpu_custom_call.1} parent=5 // pred_check_branch
        %405 = sbr.rel (%p402) target = $region60
      $region59: #{tpu_custom_call.1} parent=5 // pred_region
        %s406 = ssub.s32 %s19, 1
        %p407 = scmp.lt.s32.totalorder %s28, 1
        %s408 = scalar_select %p407, %s28, 1
        %s409 = smul.addr %s408, 8
        %s410 = scalar_lea.vmem %s0, %s409
        %p411 = pneg %p57
        %p412 = pneg %p54
        %p413 = scmp.lt.s32.totalorder %s29, 1
        %s414 = scalar_select %p413, %s29, 1
        %s415 = smul.addr %s414, 4
        %s416 = smul.addr %s415, 8
        %s417 = scalar_lea.vmem %s1, %s416
        %p418 = pneg %p83
        %p419 = pneg %p80
        %p420 = scmp.lt.s32.totalorder %s29, 1
        %s421 = scalar_select %p420, %s29, 1
        %s422 = smul.addr %s421, 4
        %s423 = smul.addr %s422, 8
        %s424 = scalar_lea.vmem %s2, %s423
        %p425 = pneg %p109
        %p426 = pneg %p106
        %p427 = scmp.lt.s32.totalorder %s29, 1
        %s428 = scalar_select %p427, %s29, 1
        %s429 = smul.addr %s428, 4
        %s430 = smul.addr %s429, 8
        %s431 = scalar_lea.vmem %s3, %s430
        %p432 = pneg %p135
        %p433 = pneg %p132
        %p434 = scmp.lt.s32.totalorder %s29, 1
        %s435 = scalar_select %p434, %s29, 1
        %s436 = scalar_lea.vmem %s4, %s435
        %p437 = pneg %p161
        %p438 = pneg %p158
        %p439 = scmp.lt.s32.totalorder %s29, 1
        %s440 = scalar_select %p439, %s29, 1
        %s441 = scalar_lea.vmem %s5, %s440
        %p442 = pneg %p187
        %p443 = pneg %p184
        %p444 = scmp.lt.s32.totalorder %s29, 1
        %s445 = scalar_select %p444, %s29, 1
        %s446 = smul.addr %s445, 2
        %s447 = smul.addr %s446, 8
        %s448 = scalar_lea.vmem %s6, %s447
        %p449 = pneg %p213
        %p450 = pneg %p210
        %p451 = pneg %p234
        %p452 = pneg %p231
        %s453 = smul.u32 4, %s29
        %p454 = scmp.lt.s32.totalorder %s453, 7
        %s455 = scalar_select %p454, %s453, 7
        %s456 = smul.addr %s455, 8
        %s457 = scalar_lea.vmem %s8, %s456
        %p458 = pneg %p260
        %p459 = pneg %p257
        %p460 = scmp.lt.s32.totalorder %s28, 1
        %s461 = scalar_select %p460, %s28, 1
        %s462 = scalar_lea.vmem %s9, %s461
        %p463 = pneg %p286
        %p464 = pneg %p283
        %p465 = pneg %p312
        %p466 = pneg %p309
        %s467 = sand.u32 %s299, 1
        %s468 = scalar_lea.sflag [#allocation5], %s467
        %s469 = sand.u32 %s299, 1
        %s470 = smul.addr %s469, 8
        %s471 = scalar_lea.vmem [#allocation4], %s470
        %p472 = scmp.lt.s32.totalorder %s28, 1
        %s473 = scalar_select %p472, %s28, 1
        %s474 = smul.addr %s473, 8
        %s475 = scalar_lea.vmem %s0, %s474
        %p476 = scmp.lt.s32.totalorder %s29, 1
        %s477 = scalar_select %p476, %s29, 1
        %s478 = smul.addr %s477, 4
        %s479 = smul.addr %s478, 8
        %s480 = scalar_lea.vmem %s1, %s479
        %p481 = scmp.lt.s32.totalorder %s29, 1
        %s482 = scalar_select %p481, %s29, 1
        %s483 = smul.addr %s482, 4
        %s484 = smul.addr %s483, 8
        %s485 = scalar_lea.vmem %s2, %s484
        %p486 = scmp.lt.s32.totalorder %s29, 1
        %s487 = scalar_select %p486, %s29, 1
        %s488 = smul.addr %s487, 4
        %s489 = smul.addr %s488, 8
        %s490 = scalar_lea.vmem %s3, %s489
        %p491 = scmp.lt.s32.totalorder %s29, 1
        %s492 = scalar_select %p491, %s29, 1
        %s493 = scalar_lea.vmem %s4, %s492
        %p494 = scmp.lt.s32.totalorder %s29, 1
        %s495 = scalar_select %p494, %s29, 1
        %s496 = scalar_lea.vmem %s5, %s495
        %p497 = scmp.lt.s32.totalorder %s29, 1
        %s498 = scalar_select %p497, %s29, 1
        %s499 = smul.addr %s498, 2
        %s500 = smul.addr %s499, 8
        %s501 = scalar_lea.vmem %s6, %s500
        %s502 = smul.u32 4, %s29
        %p503 = scmp.lt.s32.totalorder %s502, 7
        %s504 = scalar_select %p503, %s502, 7
        %s505 = smul.addr %s504, 8
        %s506 = scalar_lea.vmem %s8, %s505
        %s507 = smul.u32 4, %s29
        %p508 = scmp.lt.s32.totalorder %s28, 1
        %s509 = scalar_select %p508, %s28, 1
        %s510 = scalar_lea.vmem %s9, %s509
        %p511 = scmp.eq.s32.totalorder %s29, 0
        // Predicated region
        $region61: #{tpu_custom_call.1} parent=59 // pred_check
          %p512 = pneg %p511
        $region62: #{tpu_custom_call.1} parent=59 // pred_check_branch
          %514 = sbr.rel (%p512) target = $region64
        $region63: #{tpu_custom_call.1} parent=59 // pred_region
          %vm515 = vcmask 261120
          %516 = vst.msk [vmem:[#allocation3] sm:$0xff] %vm515, 0.0
        $region64: #{tpu_custom_call.1} parent=59 // pred_fallthru
          _
        %v517 = vld [vmem:[%s475] sm:$0xff]
        %v518 = vld [vmem:[%s480] sm:$0xff]
        %v519 = vld [vmem:[%s480 + $0x8] sm:$0xff]
        %v520 = vld [vmem:[%s480 + $0x10] sm:$0xff]
        %v521 = vld [vmem:[%s480 + $0x18] sm:$0xff]
        %v522 = vld [vmem:[%s493] sm:$0x1]
        %v524 = vlaneseq
        %v525 = vshrl.u32 %v524, 7
        %v526 = vsub.s32 0, %v525
        %v527 = vrot.slane %v522, %v526
        %vm529 = vcmask 261120
        %v531 = vsel %vm529, %v517, 0
        %533 = vmatprep.subr.mxu0 0.0
        %534 = vmatpush1.msra.mxu0 %v518
        %535 = vmatprep.subr.mxu0 0.0
        %536 = vmatpush1.msra.mxu0 %v519
        %537 = vmatprep.subr.mxu0 0.0
        %538 = vmatpush1.msra.mxu0 %v520
        %539 = vmatprep.subr.mxu0 0.0
        %540 = vmatpush1.msra.mxu0 %v521
        %541 = vmatprep.subr.mxu0 0.0
        %542 = vmatpush1.msra.mxu0 0.0
        %543 = vmatprep.subr.mxu0 0.0
        %544 = vmatpush1.msra.mxu0 0.0
        %545 = vmatprep.subr.mxu0 0.0
        %546 = vmatpush1.msra.mxu0 0.0
        %547 = vmatprep.subr.mxu0 0.0
        %548 = vmatpush1.msra.mxu0 0.0
        %549 = vmatprep.subr.mxu0 0.0
        %550 = vmatpush1.msra.mxu0 0.0
        %551 = vmatprep.subr.mxu0 0.0
        %552 = vmatpush1.msra.mxu0 0.0
        %553 = vmatprep.subr.mxu0 0.0
        %554 = vmatpush1.msra.mxu0 0.0
        %555 = vmatprep.subr.mxu0 0.0
        %556 = vmatpush1.msra.mxu0 0.0
        %557 = vmatprep.subr.mxu0 0.0
        %558 = vmatpush1.msra.mxu0 0.0
        %559 = vmatprep.subr.mxu0 0.0
        %560 = vmatpush1.msra.mxu0 0.0
        %561 = vmatprep.subr.mxu0 0.0
        %562 = vmatpush1.msra.mxu0 0.0
        %563 = vmatprep.subr.mxu0 0.0
        %564 = vmatpush1.msra.mxu0 0.0
        %565 = vmatprep.subr.mxu0 0.0
        %566 = vmatpush1.msra.mxu0 0.0
        %567 = vmatprep.subr.mxu0 0.0
        %568 = vmatpush1.msra.mxu0 0.0
        %569 = vmatprep.subr.mxu0 0.0
        %570 = vmatpush1.msra.mxu0 0.0
        %571 = vmatprep.subr.mxu0 0.0
        %572 = vmatpush1.msra.mxu0 0.0
        %573 = vmatprep.subr.mxu0 0.0
        %574 = vmatpush1.msra.mxu0 0.0
        %575 = vmatprep.subr.mxu0 0.0
        %576 = vmatpush1.msra.mxu0 0.0
        %577 = vmatprep.subr.mxu0 0.0
        %578 = vmatpush1.msra.mxu0 0.0
        %579 = vmatprep.subr.mxu0 0.0
        %580 = vmatpush1.msra.mxu0 0.0
        %581 = vmatprep.subr.mxu0 0.0
        %582 = vmatpush1.msra.mxu0 0.0
        %583 = vmatprep.subr.mxu0 0.0
        %584 = vmatpush1.msra.mxu0 0.0
        %585 = vmatprep.subr.mxu0 0.0
        %586 = vmatpush1.msra.mxu0 0.0
        %587 = vmatprep.subr.mxu0 0.0
        %588 = vmatpush1.msra.mxu0 0.0
        %589 = vmatprep.subr.mxu0 0.0
        %590 = vmatpush1.msra.mxu0 0.0
        %591 = vmatprep.subr.mxu0 0.0
        %592 = vmatpush1.msra.mxu0 0.0
        %593 = vmatprep.subr.mxu0 0.0
        %594 = vmatpush1.msra.mxu0 0.0
        %595 = vmatprep.subr.mxu0 0.0
        %596 = vmatpush1.msra.mxu0 0.0
        %597 = vmatprep.mubr.f32.mxu0 0.0
        %598 = vmatmul.mubr.f32.gmra.mrb[0].mxu0 %v531
        %v599 = vpop.f32.mrb[0].mxu0
        %v600 = vadd.f32 %v527, %v599
        %v601 = vpop.f32.mrb[0].mxu0
        %602 = vdwg.mxu0
        %v603 = vld [vmem:[%s485] sm:$0xff]
        %v604 = vld [vmem:[%s485 + $0x8] sm:$0xff]
        %v605 = vld [vmem:[%s485 + $0x10] sm:$0xff]
        %v606 = vld [vmem:[%s485 + $0x18] sm:$0xff]
        %607 = vmatprep.subr.mxu0 0.0
        %608 = vmatpush1.msra.mxu0 %v603
        %609 = vmatprep.subr.mxu0 0.0
        %610 = vmatpush1.msra.mxu0 %v604
        %611 = vmatprep.subr.mxu0 0.0
        %612 = vmatpush1.msra.mxu0 %v605
        %613 = vmatprep.subr.mxu0 0.0
        %614 = vmatpush1.msra.mxu0 %v606
        %615 = vmatprep.subr.mxu0 0.0
        %616 = vmatpush1.msra.mxu0 0.0
        %617 = vmatprep.subr.mxu0 0.0
        %618 = vmatpush1.msra.mxu0 0.0
        %619 = vmatprep.subr.mxu0 0.0
        %620 = vmatpush1.msra.mxu0 0.0
        %621 = vmatprep.subr.mxu0 0.0
        %622 = vmatpush1.msra.mxu0 0.0
        %623 = vmatprep.subr.mxu0 0.0
        %624 = vmatpush1.msra.mxu0 0.0
        %625 = vmatprep.subr.mxu0 0.0
        %626 = vmatpush1.msra.mxu0 0.0
        %627 = vmatprep.subr.mxu0 0.0
        %628 = vmatpush1.msra.mxu0 0.0
        %629 = vmatprep.subr.mxu0 0.0
        %630 = vmatpush1.msra.mxu0 0.0
        %631 = vmatprep.subr.mxu0 0.0
        %632 = vmatpush1.msra.mxu0 0.0
        %633 = vmatprep.subr.mxu0 0.0
        %634 = vmatpush1.msra.mxu0 0.0
        %635 = vmatprep.subr.mxu0 0.0
        %636 = vmatpush1.msra.mxu0 0.0
        %637 = vmatprep.subr.mxu0 0.0
        %638 = vmatpush1.msra.mxu0 0.0
        %639 = vmatprep.subr.mxu0 0.0
        %640 = vmatpush1.msra.mxu0 0.0
        %641 = vmatprep.subr.mxu0 0.0
        %642 = vmatpush1.msra.mxu0 0.0
        %643 = vmatprep.subr.mxu0 0.0
        %644 = vmatpush1.msra.mxu0 0.0
        %645 = vmatprep.subr.mxu0 0.0
        %646 = vmatpush1.msra.mxu0 0.0
        %647 = vmatprep.subr.mxu0 0.0
        %648 = vmatpush1.msra.mxu0 0.0
        %649 = vmatprep.subr.mxu0 0.0
        %650 = vmatpush1.msra.mxu0 0.0
        %651 = vmatprep.subr.mxu0 0.0
        %652 = vmatpush1.msra.mxu0 0.0
        %653 = vmatprep.subr.mxu0 0.0
        %654 = vmatpush1.msra.mxu0 0.0
        %655 = vmatprep.subr.mxu0 0.0
        %656 = vmatpush1.msra.mxu0 0.0
        %657 = vmatprep.subr.mxu0 0.0
        %658 = vmatpush1.msra.mxu0 0.0
        %659 = vmatprep.subr.mxu0 0.0
        %660 = vmatpush1.msra.mxu0 0.0
        %661 = vmatprep.subr.mxu0 0.0
        %662 = vmatpush1.msra.mxu0 0.0
        %663 = vmatprep.subr.mxu0 0.0
        %664 = vmatpush1.msra.mxu0 0.0
        %665 = vmatprep.subr.mxu0 0.0
        %666 = vmatpush1.msra.mxu0 0.0
        %667 = vmatprep.subr.mxu0 0.0
        %668 = vmatpush1.msra.mxu0 0.0
        %669 = vmatprep.subr.mxu0 0.0
        %670 = vmatpush1.msra.mxu0 0.0
        %671 = vmatprep.mubr.f32.mxu0 0.0
        %672 = vmatmul.mubr.f32.gmra.mrb[0].mxu0 %v531
        %v673 = vpop.f32.mrb[0].mxu0
        %v674 = vadd.f32 0.0, %v673
        %v675 = vpop.f32.mrb[0].mxu0
        %676 = vdwg.mxu0
        %v677 = vld [vmem:[%s490] sm:$0xff]
        %v678 = vld [vmem:[%s490 + $0x8] sm:$0xff]
        %v679 = vld [vmem:[%s490 + $0x10] sm:$0xff]
        %v680 = vld [vmem:[%s490 + $0x18] sm:$0xff]
        %v681 = vld [vmem:[%s496] sm:$0x1]
        %v683 = vlaneseq
        %v684 = vshrl.u32 %v683, 7
        %v685 = vsub.s32 0, %v684
        %v686 = vrot.slane %v681, %v685
        %688 = vmatprep.subr.mxu0 0.0
        %689 = vmatpush1.msra.mxu0 %v677
        %690 = vmatprep.subr.mxu0 0.0
        %691 = vmatpush1.msra.mxu0 %v678
        %692 = vmatprep.subr.mxu0 0.0
        %693 = vmatpush1.msra.mxu0 %v679
        %694 = vmatprep.subr.mxu0 0.0
        %695 = vmatpush1.msra.mxu0 %v680
        %696 = vmatprep.subr.mxu0 0.0
        %697 = vmatpush1.msra.mxu0 0.0
        %698 = vmatprep.subr.mxu0 0.0
        %699 = vmatpush1.msra.mxu0 0.0
        %700 = vmatprep.subr.mxu0 0.0
        %701 = vmatpush1.msra.mxu0 0.0
        %702 = vmatprep.subr.mxu0 0.0
        %703 = vmatpush1.msra.mxu0 0.0
        %704 = vmatprep.subr.mxu0 0.0
        %705 = vmatpush1.msra.mxu0 0.0
        %706 = vmatprep.subr.mxu0 0.0
        %707 = vmatpush1.msra.mxu0 0.0
        %708 = vmatprep.subr.mxu0 0.0
        %709 = vmatpush1.msra.mxu0 0.0
        %710 = vmatprep.subr.mxu0 0.0
        %711 = vmatpush1.msra.mxu0 0.0
        %712 = vmatprep.subr.mxu0 0.0
        %713 = vmatpush1.msra.mxu0 0.0
        %714 = vmatprep.subr.mxu0 0.0
        %715 = vmatpush1.msra.mxu0 0.0
        %716 = vmatprep.subr.mxu0 0.0
        %717 = vmatpush1.msra.mxu0 0.0
        %718 = vmatprep.subr.mxu0 0.0
        %719 = vmatpush1.msra.mxu0 0.0
        %720 = vmatprep.subr.mxu0 0.0
        %721 = vmatpush1.msra.mxu0 0.0
        %722 = vmatprep.subr.mxu0 0.0
        %723 = vmatpush1.msra.mxu0 0.0
        %724 = vmatprep.subr.mxu0 0.0
        %725 = vmatpush1.msra.mxu0 0.0
        %726 = vmatprep.subr.mxu0 0.0
        %727 = vmatpush1.msra.mxu0 0.0
        %728 = vmatprep.subr.mxu0 0.0
        %729 = vmatpush1.msra.mxu0 0.0
        %730 = vmatprep.subr.mxu0 0.0
        %731 = vmatpush1.msra.mxu0 0.0
        %732 = vmatprep.subr.mxu0 0.0
        %733 = vmatpush1.msra.mxu0 0.0
        %734 = vmatprep.subr.mxu0 0.0
        %735 = vmatpush1.msra.mxu0 0.0
        %736 = vmatprep.subr.mxu0 0.0
        %737 = vmatpush1.msra.mxu0 0.0
        %738 = vmatprep.subr.mxu0 0.0
        %739 = vmatpush1.msra.mxu0 0.0
        %740 = vmatprep.subr.mxu0 0.0
        %741 = vmatpush1.msra.mxu0 0.0
        %742 = vmatprep.subr.mxu0 0.0
        %743 = vmatpush1.msra.mxu0 0.0
        %744 = vmatprep.subr.mxu0 0.0
        %745 = vmatpush1.msra.mxu0 0.0
        %746 = vmatprep.subr.mxu0 0.0
        %747 = vmatpush1.msra.mxu0 0.0
        %748 = vmatprep.subr.mxu0 0.0
        %749 = vmatpush1.msra.mxu0 0.0
        %750 = vmatprep.subr.mxu0 0.0
        %751 = vmatpush1.msra.mxu0 0.0
        %752 = vmatprep.mubr.f32.mxu0 0.0
        %753 = vmatmul.mubr.f32.gmra.mrb[0].mxu0 %v531
        %v754 = vpop.f32.mrb[0].mxu0
        %v755 = vadd.f32 %v686, %v754
        %v756 = vpop.f32.mrb[0].mxu0
        %757 = vdwg.mxu0
        %v758 = vld [vmem:[%s510] sm:$0x1]
        %v759 = vld [vmem:[%s506] sm:$0xff]
        %vm760 = vcmask 31744
        %v762 = vsel %vm760, %v600, 0
        %v765 = vsel %vm760, %v674, 0
        %767 = vmatprep.subr.mxu0 0.0
        %768 = vmatpush1.xpose.msra.mxu0 %v765
        %769 = vmatprep.subr.mxu0 0.0
        %770 = vmatpush1.xpose.msra.mxu0 0.0
        %771 = vmatprep.subr.mxu0 0.0
        %772 = vmatpush1.xpose.msra.mxu0 0.0
        %773 = vmatprep.subr.mxu0 0.0
        %774 = vmatpush1.xpose.msra.mxu0 0.0
        %775 = vmatprep.subr.mxu0 0.0
        %776 = vmatpush1.xpose.msra.mxu0 0.0
        %777 = vmatprep.subr.mxu0 0.0
        %778 = vmatpush1.xpose.msra.mxu0 0.0
        %779 = vmatprep.subr.mxu0 0.0
        %780 = vmatpush1.xpose.msra.mxu0 0.0
        %781 = vmatprep.subr.mxu0 0.0
        %782 = vmatpush1.xpose.msra.mxu0 0.0
        %783 = vmatprep.subr.mxu0 0.0
        %784 = vmatpush1.xpose.msra.mxu0 0.0
        %785 = vmatprep.subr.mxu0 0.0
        %786 = vmatpush1.xpose.msra.mxu0 0.0
        %787 = vmatprep.subr.mxu0 0.0
        %788 = vmatpush1.xpose.msra.mxu0 0.0
        %789 = vmatprep.subr.mxu0 0.0
        %790 = vmatpush1.xpose.msra.mxu0 0.0
        %791 = vmatprep.subr.mxu0 0.0
        %792 = vmatpush1.xpose.msra.mxu0 0.0
        %793 = vmatprep.subr.mxu0 0.0
        %794 = vmatpush1.xpose.msra.mxu0 0.0
        %795 = vmatprep.subr.mxu0 0.0
        %796 = vmatpush1.xpose.msra.mxu0 0.0
        %797 = vmatprep.subr.mxu0 0.0
        %798 = vmatpush1.xpose.msra.mxu0 0.0
        %799 = vmatprep.subr.mxu0 0.0
        %800 = vmatpush1.xpose.msra.mxu0 0.0
        %801 = vmatprep.subr.mxu0 0.0
        %802 = vmatpush1.xpose.msra.mxu0 0.0
        %803 = vmatprep.subr.mxu0 0.0
        %804 = vmatpush1.xpose.msra.mxu0 0.0
        %805 = vmatprep.subr.mxu0 0.0
        %806 = vmatpush1.xpose.msra.mxu0 0.0
        %807 = vmatprep.subr.mxu0 0.0
        %808 = vmatpush1.xpose.msra.mxu0 0.0
        %809 = vmatprep.subr.mxu0 0.0
        %810 = vmatpush1.xpose.msra.mxu0 0.0
        %811 = vmatprep.subr.mxu0 0.0
        %812 = vmatpush1.xpose.msra.mxu0 0.0
        %813 = vmatprep.subr.mxu0 0.0
        %814 = vmatpush1.xpose.msra.mxu0 0.0
        %815 = vmatprep.subr.mxu0 0.0
        %816 = vmatpush1.xpose.msra.mxu0 0.0
        %817 = vmatprep.subr.mxu0 0.0
        %818 = vmatpush1.xpose.msra.mxu0 0.0
        %819 = vmatprep.subr.mxu0 0.0
        %820 = vmatpush1.xpose.msra.mxu0 0.0
        %821 = vmatprep.subr.mxu0 0.0
        %822 = vmatpush1.xpose.msra.mxu0 0.0
        %823 = vmatprep.subr.mxu0 0.0
        %824 = vmatpush1.xpose.msra.mxu0 0.0
        %825 = vmatprep.subr.mxu0 0.0
        %826 = vmatpush1.xpose.msra.mxu0 0.0
        %827 = vmatprep.subr.mxu0 0.0
        %828 = vmatpush1.xpose.msra.mxu0 0.0
        %829 = vmatprep.subr.mxu0 0.0
        %830 = vmatpush1.xpose.msra.mxu0 0.0
        %831 = vmatprep.mubr.f32.mxu0 0.0
        %832 = vmatmul.mubr.f32.gmra.mrb[0].mxu0 %v762
        %v833 = vpop.f32.mrb[0].mxu0
        %v834 = vadd.f32 %v759, %v833
        %v835 = vpop.f32.mrb[0].mxu0
        %836 = vdwg.mxu0
        %v838 = vlaneseq
        %v839 = vshrl.u32 %v838, 7
        %v840 = vsub.s32 0, %v839
        %v841 = vrot.slane %v758, %v840
        %v843 = vadd.f32 %v834, %v841
        %vm844 = vcmask 64512
        %v845 = vsel %vm844, %v843, -inf
        %846 = vmax.xlane.f32.xlu0 %v845
        %v847 = vpop.xlane.xlu0 %846
        %v848 = vsub.f32 %v843, %v847
        %v849 = vmul.f32 %v848, 1.442695
        %v850 = vpow.pop %v849
        %v851 = vsel %vm844, %v850, 0.0
        %852 = vadd.xlane.f32.xlu0 %v851
        %v853 = vpop.xlane.xlu0 %852
        %v854 = vrcp.pop %v853
        %v855 = vmul.f32 %v850, %v854
        %v857 = vsel %vm844, %v855, 0
        %859 = vmatprep.subr.mxu0 0.0
        %860 = vmatpush1.msra.mxu0 %v755
        %861 = vmatprep.subr.mxu0 0.0
        %862 = vmatpush1.msra.mxu0 0.0
        %863 = vmatprep.subr.mxu0 0.0
        %864 = vmatpush1.msra.mxu0 0.0
        %865 = vmatprep.subr.mxu0 0.0
        %866 = vmatpush1.msra.mxu0 0.0
        %867 = vmatprep.subr.mxu0 0.0
        %868 = vmatpush1.msra.mxu0 0.0
        %869 = vmatprep.subr.mxu0 0.0
        %870 = vmatpush1.msra.mxu0 0.0
        %871 = vmatprep.subr.mxu0 0.0
        %872 = vmatpush1.msra.mxu0 0.0
        %873 = vmatprep.subr.mxu0 0.0
        %874 = vmatpush1.msra.mxu0 0.0
        %875 = vmatprep.subr.mxu0 0.0
        %876 = vmatpush1.msra.mxu0 0.0
        %877 = vmatprep.subr.mxu0 0.0
        %878 = vmatpush1.msra.mxu0 0.0
        %879 = vmatprep.subr.mxu0 0.0
        %880 = vmatpush1.msra.mxu0 0.0
        %881 = vmatprep.subr.mxu0 0.0
        %882 = vmatpush1.msra.mxu0 0.0
        %883 = vmatprep.subr.mxu0 0.0
        %884 = vmatpush1.msra.mxu0 0.0
        %885 = vmatprep.subr.mxu0 0.0
        %886 = vmatpush1.msra.mxu0 0.0
        %887 = vmatprep.subr.mxu0 0.0
        %888 = vmatpush1.msra.mxu0 0.0
        %889 = vmatprep.subr.mxu0 0.0
        %890 = vmatpush1.msra.mxu0 0.0
        %891 = vmatprep.subr.mxu0 0.0
        %892 = vmatpush1.msra.mxu0 0.0
        %893 = vmatprep.subr.mxu0 0.0
        %894 = vmatpush1.msra.mxu0 0.0
        %895 = vmatprep.subr.mxu0 0.0
        %896 = vmatpush1.msra.mxu0 0.0
        %897 = vmatprep.subr.mxu0 0.0
        %898 = vmatpush1.msra.mxu0 0.0
        %899 = vmatprep.subr.mxu0 0.0
        %900 = vmatpush1.msra.mxu0 0.0
        %901 = vmatprep.subr.mxu0 0.0
        %902 = vmatpush1.msra.mxu0 0.0
        %903 = vmatprep.subr.mxu0 0.0
        %904 = vmatpush1.msra.mxu0 0.0
        %905 = vmatprep.subr.mxu0 0.0
        %906 = vmatpush1.msra.mxu0 0.0
        %907 = vmatprep.subr.mxu0 0.0
        %908 = vmatpush1.msra.mxu0 0.0
        %909 = vmatprep.subr.mxu0 0.0
        %910 = vmatpush1.msra.mxu0 0.0
        %911 = vmatprep.subr.mxu0 0.0
        %912 = vmatpush1.msra.mxu0 0.0
        %913 = vmatprep.subr.mxu0 0.0
        %914 = vmatpush1.msra.mxu0 0.0
        %915 = vmatprep.subr.mxu0 0.0
        %916 = vmatpush1.msra.mxu0 0.0
        %917 = vmatprep.subr.mxu0 0.0
        %918 = vmatpush1.msra.mxu0 0.0
        %919 = vmatprep.subr.mxu0 0.0
        %920 = vmatpush1.msra.mxu0 0.0
        %921 = vmatprep.subr.mxu0 0.0
        %922 = vmatpush1.msra.mxu0 0.0
        %923 = vmatprep.mubr.f32.mxu0 0.0
        %924 = vmatmul.mubr.f32.gmra.mrb[0].mxu0 %v857
        %v925 = vpop.f32.mrb[0].mxu0
        %v926 = vadd.f32 0.0, %v925
        %v927 = vpop.f32.mrb[0].mxu0
        %928 = vdwg.mxu0
        %929 = vst.msk [vmem:[#allocation2] sm:$0xff] %vm760, %v926
        %s930 = scalar_lea.vmem %s506, 8
        %v931 = vld [vmem:[%s930] sm:$0xff]
        %932 = vrot.lane.b32.xlu0 %v600, 124
        %v933 = vpop.permute.xlu0 %932
        %934 = vrot.lane.b32.xlu0 %v674, 124
        %v935 = vpop.permute.xlu0 %934
        %v936 = vsel %vm760, %v933, 0
        %v938 = vsel %vm760, %v935, 0
        %940 = vmatprep.subr.mxu0 0.0
        %941 = vmatpush1.xpose.msra.mxu0 %v938
        %942 = vmatprep.subr.mxu0 0.0
        %943 = vmatpush1.xpose.msra.mxu0 0.0
        %944 = vmatprep.subr.mxu0 0.0
        %945 = vmatpush1.xpose.msra.mxu0 0.0
        %946 = vmatprep.subr.mxu0 0.0
        %947 = vmatpush1.xpose.msra.mxu0 0.0
        %948 = vmatprep.subr.mxu0 0.0
        %949 = vmatpush1.xpose.msra.mxu0 0.0
        %950 = vmatprep.subr.mxu0 0.0
        %951 = vmatpush1.xpose.msra.mxu0 0.0
        %952 = vmatprep.subr.mxu0 0.0
        %953 = vmatpush1.xpose.msra.mxu0 0.0
        %954 = vmatprep.subr.mxu0 0.0
        %955 = vmatpush1.xpose.msra.mxu0 0.0
        %956 = vmatprep.subr.mxu0 0.0
        %957 = vmatpush1.xpose.msra.mxu0 0.0
        %958 = vmatprep.subr.mxu0 0.0
        %959 = vmatpush1.xpose.msra.mxu0 0.0
        %960 = vmatprep.subr.mxu0 0.0
        %961 = vmatpush1.xpose.msra.mxu0 0.0
        %962 = vmatprep.subr.mxu0 0.0
        %963 = vmatpush1.xpose.msra.mxu0 0.0
        %964 = vmatprep.subr.mxu0 0.0
        %965 = vmatpush1.xpose.msra.mxu0 0.0
        %966 = vmatprep.subr.mxu0 0.0
        %967 = vmatpush1.xpose.msra.mxu0 0.0
        %968 = vmatprep.subr.mxu0 0.0
        %969 = vmatpush1.xpose.msra.mxu0 0.0
        %970 = vmatprep.subr.mxu0 0.0
        %971 = vmatpush1.xpose.msra.mxu0 0.0
        %972 = vmatprep.subr.mxu0 0.0
        %973 = vmatpush1.xpose.msra.mxu0 0.0
        %974 = vmatprep.subr.mxu0 0.0
        %975 = vmatpush1.xpose.msra.mxu0 0.0
        %976 = vmatprep.subr.mxu0 0.0
        %977 = vmatpush1.xpose.msra.mxu0 0.0
        %978 = vmatprep.subr.mxu0 0.0
        %979 = vmatpush1.xpose.msra.mxu0 0.0
        %980 = vmatprep.subr.mxu0 0.0
        %981 = vmatpush1.xpose.msra.mxu0 0.0
        %982 = vmatprep.subr.mxu0 0.0
        %983 = vmatpush1.xpose.msra.mxu0 0.0
        %984 = vmatprep.subr.mxu0 0.0
        %985 = vmatpush1.xpose.msra.mxu0 0.0
        %986 = vmatprep.subr.mxu0 0.0
        %987 = vmatpush1.xpose.msra.mxu0 0.0
        %988 = vmatprep.subr.mxu0 0.0
        %989 = vmatpush1.xpose.msra.mxu0 0.0
        %990 = vmatprep.subr.mxu0 0.0
        %991 = vmatpush1.xpose.msra.mxu0 0.0
        %992 = vmatprep.subr.mxu0 0.0
        %993 = vmatpush1.xpose.msra.mxu0 0.0
        %994 = vmatprep.subr.mxu0 0.0
        %995 = vmatpush1.xpose.msra.mxu0 0.0
        %996 = vmatprep.subr.mxu0 0.0
        %997 = vmatpush1.xpose.msra.mxu0 0.0
        %998 = vmatprep.subr.mxu0 0.0
        %999 = vmatpush1.xpose.msra.mxu0 0.0
        %1000 = vmatprep.subr.mxu0 0.0
        %1001 = vmatpush1.xpose.msra.mxu0 0.0
        %1002 = vmatprep.subr.mxu0 0.0
        %1003 = vmatpush1.xpose.msra.mxu0 0.0
        %1004 = vmatprep.mubr.f32.mxu0 0.0
        %1005 = vmatmul.mubr.f32.gmra.mrb[0].mxu0 %v936
        %v1006 = vpop.f32.mrb[0].mxu0
        %v1007 = vadd.f32 %v931, %v1006
        %v1008 = vpop.f32.mrb[0].mxu0
        %1009 = vdwg.mxu0
        %v1010 = vadd.f32 %v1007, %v841
        %v1011 = vsel %vm844, %v1010, -inf
        %1012 = vmax.xlane.f32.xlu0 %v1011
        %v1013 = vpop.xlane.xlu0 %1012
        %v1014 = vsub.f32 %v1010, %v1013
        %v1015 = vmul.f32 %v1014, 1.442695
        %v1016 = vpow.pop %v1015
        %v1017 = vsel %vm844, %v1016, 0.0
        %1018 = vadd.xlane.f32.xlu0 %v1017
        %v1019 = vpop.xlane.xlu0 %1018
        %v1020 = vrcp.pop %v1019
        %v1021 = vmul.f32 %v1016, %v1020
        %1023 = vrot.lane.b32.xlu0 %v755, 124
        %v1024 = vpop.permute.xlu0 %1023
        %v1027 = vsel %vm844, %v1021, 0
        %1029 = vmatprep.subr.mxu0 0.0
        %1030 = vmatpush1.msra.mxu0 %v1024
        %1031 = vmatprep.subr.mxu0 0.0
        %1032 = vmatpush1.msra.mxu0 0.0
        %1033 = vmatprep.subr.mxu0 0.0
        %1034 = vmatpush1.msra.mxu0 0.0
        %1035 = vmatprep.subr.mxu0 0.0
        %1036 = vmatpush1.msra.mxu0 0.0
        %1037 = vmatprep.subr.mxu0 0.0
        %1038 = vmatpush1.msra.mxu0 0.0
        %1039 = vmatprep.subr.mxu0 0.0
        %1040 = vmatpush1.msra.mxu0 0.0
        %1041 = vmatprep.subr.mxu0 0.0
        %1042 = vmatpush1.msra.mxu0 0.0
        %1043 = vmatprep.subr.mxu0 0.0
        %1044 = vmatpush1.msra.mxu0 0.0
        %1045 = vmatprep.subr.mxu0 0.0
        %1046 = vmatpush1.msra.mxu0 0.0
        %1047 = vmatprep.subr.mxu0 0.0
        %1048 = vmatpush1.msra.mxu0 0.0
        %1049 = vmatprep.subr.mxu0 0.0
        %1050 = vmatpush1.msra.mxu0 0.0
        %1051 = vmatprep.subr.mxu0 0.0
        %1052 = vmatpush1.msra.mxu0 0.0
        %1053 = vmatprep.subr.mxu0 0.0
        %1054 = vmatpush1.msra.mxu0 0.0
        %1055 = vmatprep.subr.mxu0 0.0
        %1056 = vmatpush1.msra.mxu0 0.0
        %1057 = vmatprep.subr.mxu0 0.0
        %1058 = vmatpush1.msra.mxu0 0.0
        %1059 = vmatprep.subr.mxu0 0.0
        %1060 = vmatpush1.msra.mxu0 0.0
        %1061 = vmatprep.subr.mxu0 0.0
        %1062 = vmatpush1.msra.mxu0 0.0
        %1063 = vmatprep.subr.mxu0 0.0
        %1064 = vmatpush1.msra.mxu0 0.0
        %1065 = vmatprep.subr.mxu0 0.0
        %1066 = vmatpush1.msra.mxu0 0.0
        %1067 = vmatprep.subr.mxu0 0.0
        %1068 = vmatpush1.msra.mxu0 0.0
        %1069 = vmatprep.subr.mxu0 0.0
        %1070 = vmatpush1.msra.mxu0 0.0
        %1071 = vmatprep.subr.mxu0 0.0
        %1072 = vmatpush1.msra.mxu0 0.0
        %1073 = vmatprep.subr.mxu0 0.0
        %1074 = vmatpush1.msra.mxu0 0.0
        %1075 = vmatprep.subr.mxu0 0.0
        %1076 = vmatpush1.msra.mxu0 0.0
        %1077 = vmatprep.subr.mxu0 0.0
        %1078 = vmatpush1.msra.mxu0 0.0
        %1079 = vmatprep.subr.mxu0 0.0
        %1080 = vmatpush1.msra.mxu0 0.0
        %1081 = vmatprep.subr.mxu0 0.0
        %1082 = vmatpush1.msra.mxu0 0.0
        %1083 = vmatprep.subr.mxu0 0.0
        %1084 = vmatpush1.msra.mxu0 0.0
        %1085 = vmatprep.subr.mxu0 0.0
        %1086 = vmatpush1.msra.mxu0 0.0
        %1087 = vmatprep.subr.mxu0 0.0
        %1088 = vmatpush1.msra.mxu0 0.0
        %1089 = vmatprep.subr.mxu0 0.0
        %1090 = vmatpush1.msra.mxu0 0.0
        %1091 = vmatprep.subr.mxu0 0.0
        %1092 = vmatpush1.msra.mxu0 0.0
        %1093 = vmatprep.mubr.f32.mxu0 0.0
        %1094 = vmatmul.mubr.f32.gmra.mrb[0].mxu0 %v1027
        %v1095 = vpop.f32.mrb[0].mxu0
        %v1096 = vadd.f32 0.0, %v1095
        %v1097 = vpop.f32.mrb[0].mxu0
        %1098 = vdwg.mxu0
        %1100 = vrot.lane.b32.xlu0 %v1096, 4
        %v1101 = vpop.permute.xlu0 %1100
        %vm1103 = vcmask 64544
        %1104 = vst.msk [vmem:[#allocation2] sm:$0xff] %vm1103, %v1101
        %s1105 = scalar_lea.vmem %s506, 16
        %v1106 = vld [vmem:[%s1105] sm:$0xff]
        %1107 = vrot.lane.b32.xlu0 %v600, 120
        %v1108 = vpop.permute.xlu0 %1107
        %1109 = vrot.lane.b32.xlu0 %v674, 120
        %v1110 = vpop.permute.xlu0 %1109
        %v1111 = vsel %vm760, %v1108, 0
        %v1113 = vsel %vm760, %v1110, 0
        %1115 = vmatprep.subr.mxu0 0.0
        %1116 = vmatpush1.xpose.msra.mxu0 %v1113
        %1117 = vmatprep.subr.mxu0 0.0
        %1118 = vmatpush1.xpose.msra.mxu0 0.0
        %1119 = vmatprep.subr.mxu0 0.0
        %1120 = vmatpush1.xpose.msra.mxu0 0.0
        %1121 = vmatprep.subr.mxu0 0.0
        %1122 = vmatpush1.xpose.msra.mxu0 0.0
        %1123 = vmatprep.subr.mxu0 0.0
        %1124 = vmatpush1.xpose.msra.mxu0 0.0
        %1125 = vmatprep.subr.mxu0 0.0
        %1126 = vmatpush1.xpose.msra.mxu0 0.0
        %1127 = vmatprep.subr.mxu0 0.0
        %1128 = vmatpush1.xpose.msra.mxu0 0.0
        %1129 = vmatprep.subr.mxu0 0.0
        %1130 = vmatpush1.xpose.msra.mxu0 0.0
        %1131 = vmatprep.subr.mxu0 0.0
        %1132 = vmatpush1.xpose.msra.mxu0 0.0
        %1133 = vmatprep.subr.mxu0 0.0
        %1134 = vmatpush1.xpose.msra.mxu0 0.0
        %1135 = vmatprep.subr.mxu0 0.0
        %1136 = vmatpush1.xpose.msra.mxu0 0.0
        %1137 = vmatprep.subr.mxu0 0.0
        %1138 = vmatpush1.xpose.msra.mxu0 0.0
        %1139 = vmatprep.subr.mxu0 0.0
        %1140 = vmatpush1.xpose.msra.mxu0 0.0
        %1141 = vmatprep.subr.mxu0 0.0
        %1142 = vmatpush1.xpose.msra.mxu0 0.0
        %1143 = vmatprep.subr.mxu0 0.0
        %1144 = vmatpush1.xpose.msra.mxu0 0.0
        %1145 = vmatprep.subr.mxu0 0.0
        %1146 = vmatpush1.xpose.msra.mxu0 0.0
        %1147 = vmatprep.subr.mxu0 0.0
        %1148 = vmatpush1.xpose.msra.mxu0 0.0
        %1149 = vmatprep.subr.mxu0 0.0
        %1150 = vmatpush1.xpose.msra.mxu0 0.0
        %1151 = vmatprep.subr.mxu0 0.0
        %1152 = vmatpush1.xpose.msra.mxu0 0.0
        %1153 = vmatprep.subr.mxu0 0.0
        %1154 = vmatpush1.xpose.msra.mxu0 0.0
        %1155 = vmatprep.subr.mxu0 0.0
        %1156 = vmatpush1.xpose.msra.mxu0 0.0
        %1157 = vmatprep.subr.mxu0 0.0
        %1158 = vmatpush1.xpose.msra.mxu0 0.0
        %1159 = vmatprep.subr.mxu0 0.0
        %1160 = vmatpush1.xpose.msra.mxu0 0.0
        %1161 = vmatprep.subr.mxu0 0.0
        %1162 = vmatpush1.xpose.msra.mxu0 0.0
        %1163 = vmatprep.subr.mxu0 0.0
        %1164 = vmatpush1.xpose.msra.mxu0 0.0
        %1165 = vmatprep.subr.mxu0 0.0
        %1166 = vmatpush1.xpose.msra.mxu0 0.0
        %1167 = vmatprep.subr.mxu0 0.0
        %1168 = vmatpush1.xpose.msra.mxu0 0.0
        %1169 = vmatprep.subr.mxu0 0.0
        %1170 = vmatpush1.xpose.msra.mxu0 0.0
        %1171 = vmatprep.subr.mxu0 0.0
        %1172 = vmatpush1.xpose.msra.mxu0 0.0
        %1173 = vmatprep.subr.mxu0 0.0
        %1174 = vmatpush1.xpose.msra.mxu0 0.0
        %1175 = vmatprep.subr.mxu0 0.0
        %1176 = vmatpush1.xpose.msra.mxu0 0.0
        %1177 = vmatprep.subr.mxu0 0.0
        %1178 = vmatpush1.xpose.msra.mxu0 0.0
        %1179 = vmatprep.mubr.f32.mxu0 0.0
        %1180 = vmatmul.mubr.f32.gmra.mrb[0].mxu0 %v1111
        %v1181 = vpop.f32.mrb[0].mxu0
        %v1182 = vadd.f32 %v1106, %v1181
        %v1183 = vpop.f32.mrb[0].mxu0
        %1184 = vdwg.mxu0
        %v1185 = vadd.f32 %v1182, %v841
        %v1186 = vsel %vm844, %v1185, -inf
        %1187 = vmax.xlane.f32.xlu0 %v1186
        %v1188 = vpop.xlane.xlu0 %1187
        %v1189 = vsub.f32 %v1185, %v1188
        %v1190 = vmul.f32 %v1189, 1.442695
        %v1191 = vpow.pop %v1190
        %v1192 = vsel %vm844, %v1191, 0.0
        %1193 = vadd.xlane.f32.xlu0 %v1192
        %v1194 = vpop.xlane.xlu0 %1193
        %v1195 = vrcp.pop %v1194
        %v1196 = vmul.f32 %v1191, %v1195
        %1197 = vrot.lane.b32.xlu0 %v755, 120
        %v1198 = vpop.permute.xlu0 %1197
        %v1201 = vsel %vm844, %v1196, 0
        %1203 = vmatprep.subr.mxu0 0.0
        %1204 = vmatpush1.msra.mxu0 %v1198
        %1205 = vmatprep.subr.mxu0 0.0
        %1206 = vmatpush1.msra.mxu0 0.0
        %1207 = vmatprep.subr.mxu0 0.0
        %1208 = vmatpush1.msra.mxu0 0.0
        %1209 = vmatprep.subr.mxu0 0.0
        %1210 = vmatpush1.msra.mxu0 0.0
        %1211 = vmatprep.subr.mxu0 0.0
        %1212 = vmatpush1.msra.mxu0 0.0
        %1213 = vmatprep.subr.mxu0 0.0
        %1214 = vmatpush1.msra.mxu0 0.0
        %1215 = vmatprep.subr.mxu0 0.0
        %1216 = vmatpush1.msra.mxu0 0.0
        %1217 = vmatprep.subr.mxu0 0.0
        %1218 = vmatpush1.msra.mxu0 0.0
        %1219 = vmatprep.subr.mxu0 0.0
        %1220 = vmatpush1.msra.mxu0 0.0
        %1221 = vmatprep.subr.mxu0 0.0
        %1222 = vmatpush1.msra.mxu0 0.0
        %1223 = vmatprep.subr.mxu0 0.0
        %1224 = vmatpush1.msra.mxu0 0.0
        %1225 = vmatprep.subr.mxu0 0.0
        %1226 = vmatpush1.msra.mxu0 0.0
        %1227 = vmatprep.subr.mxu0 0.0
        %1228 = vmatpush1.msra.mxu0 0.0
        %1229 = vmatprep.subr.mxu0 0.0
        %1230 = vmatpush1.msra.mxu0 0.0
        %1231 = vmatprep.subr.mxu0 0.0
        %1232 = vmatpush1.msra.mxu0 0.0
        %1233 = vmatprep.subr.mxu0 0.0
        %1234 = vmatpush1.msra.mxu0 0.0
        %1235 = vmatprep.subr.mxu0 0.0
        %1236 = vmatpush1.msra.mxu0 0.0
        %1237 = vmatprep.subr.mxu0 0.0
        %1238 = vmatpush1.msra.mxu0 0.0
        %1239 = vmatprep.subr.mxu0 0.0
        %1240 = vmatpush1.msra.mxu0 0.0
        %1241 = vmatprep.subr.mxu0 0.0
        %1242 = vmatpush1.msra.mxu0 0.0
        %1243 = vmatprep.subr.mxu0 0.0
        %1244 = vmatpush1.msra.mxu0 0.0
        %1245 = vmatprep.subr.mxu0 0.0
        %1246 = vmatpush1.msra.mxu0 0.0
        %1247 = vmatprep.subr.mxu0 0.0
        %1248 = vmatpush1.msra.mxu0 0.0
        %1249 = vmatprep.subr.mxu0 0.0
        %1250 = vmatpush1.msra.mxu0 0.0
        %1251 = vmatprep.subr.mxu0 0.0
        %1252 = vmatpush1.msra.mxu0 0.0
        %1253 = vmatprep.subr.mxu0 0.0
        %1254 = vmatpush1.msra.mxu0 0.0
        %1255 = vmatprep.subr.mxu0 0.0
        %1256 = vmatpush1.msra.mxu0 0.0
        %1257 = vmatprep.subr.mxu0 0.0
        %1258 = vmatpush1.msra.mxu0 0.0
        %1259 = vmatprep.subr.mxu0 0.0
        %1260 = vmatpush1.msra.mxu0 0.0
        %1261 = vmatprep.subr.mxu0 0.0
        %1262 = vmatpush1.msra.mxu0 0.0
        %1263 = vmatprep.subr.mxu0 0.0
        %1264 = vmatpush1.msra.mxu0 0.0
        %1265 = vmatprep.subr.mxu0 0.0
        %1266 = vmatpush1.msra.mxu0 0.0
        %1267 = vmatprep.mubr.f32.mxu0 0.0
        %1268 = vmatmul.mubr.f32.gmra.mrb[0].mxu0 %v1201
        %v1269 = vpop.f32.mrb[0].mxu0
        %v1270 = vadd.f32 0.0, %v1269
        %v1271 = vpop.f32.mrb[0].mxu0
        %1272 = vdwg.mxu0
        %1274 = vrot.lane.b32.xlu0 %v1270, 8
        %v1275 = vpop.permute.xlu0 %1274
        %vm1277 = vcmask 97344
        %1278 = vst.msk [vmem:[#allocation2] sm:$0xff] %vm1277, %v1275
        %s1279 = scalar_lea.vmem %s506, 24
        %v1280 = vld [vmem:[%s1279] sm:$0xff]
        %1281 = vrot.lane.b32.xlu0 %v600, 116
        %v1282 = vpop.permute.xlu0 %1281
        %1283 = vrot.lane.b32.xlu0 %v674, 116
        %v1284 = vpop.permute.xlu0 %1283
        %v1285 = vsel %vm760, %v1282, 0
        %v1287 = vsel %vm760, %v1284, 0
        %1289 = vmatprep.subr.mxu0 0.0
        %1290 = vmatpush1.xpose.msra.mxu0 %v1287
        %1291 = vmatprep.subr.mxu0 0.0
        %1292 = vmatpush1.xpose.msra.mxu0 0.0
        %1293 = vmatprep.subr.mxu0 0.0
        %1294 = vmatpush1.xpose.msra.mxu0 0.0
        %1295 = vmatprep.subr.mxu0 0.0
        %1296 = vmatpush1.xpose.msra.mxu0 0.0
        %1297 = vmatprep.subr.mxu0 0.0
        %1298 = vmatpush1.xpose.msra.mxu0 0.0
        %1299 = vmatprep.subr.mxu0 0.0
        %1300 = vmatpush1.xpose.msra.mxu0 0.0
        %1301 = vmatprep.subr.mxu0 0.0
        %1302 = vmatpush1.xpose.msra.mxu0 0.0
        %1303 = vmatprep.subr.mxu0 0.0
        %1304 = vmatpush1.xpose.msra.mxu0 0.0
        %1305 = vmatprep.subr.mxu0 0.0
        %1306 = vmatpush1.xpose.msra.mxu0 0.0
        %1307 = vmatprep.subr.mxu0 0.0
        %1308 = vmatpush1.xpose.msra.mxu0 0.0
        %1309 = vmatprep.subr.mxu0 0.0
        %1310 = vmatpush1.xpose.msra.mxu0 0.0
        %1311 = vmatprep.subr.mxu0 0.0
        %1312 = vmatpush1.xpose.msra.mxu0 0.0
        %1313 = vmatprep.subr.mxu0 0.0
        %1314 = vmatpush1.xpose.msra.mxu0 0.0
        %1315 = vmatprep.subr.mxu0 0.0
        %1316 = vmatpush1.xpose.msra.mxu0 0.0
        %1317 = vmatprep.subr.mxu0 0.0
        %1318 = vmatpush1.xpose.msra.mxu0 0.0
        %1319 = vmatprep.subr.mxu0 0.0
        %1320 = vmatpush1.xpose.msra.mxu0 0.0
        %1321 = vmatprep.subr.mxu0 0.0
        %1322 = vmatpush1.xpose.msra.mxu0 0.0
        %1323 = vmatprep.subr.mxu0 0.0
        %1324 = vmatpush1.xpose.msra.mxu0 0.0
        %1325 = vmatprep.subr.mxu0 0.0
        %1326 = vmatpush1.xpose.msra.mxu0 0.0
        %1327 = vmatprep.subr.mxu0 0.0
        %1328 = vmatpush1.xpose.msra.mxu0 0.0
        %1329 = vmatprep.subr.mxu0 0.0
        %1330 = vmatpush1.xpose.msra.mxu0 0.0
        %1331 = vmatprep.subr.mxu0 0.0
        %1332 = vmatpush1.xpose.msra.mxu0 0.0
        %1333 = vmatprep.subr.mxu0 0.0
        %1334 = vmatpush1.xpose.msra.mxu0 0.0
        %1335 = vmatprep.subr.mxu0 0.0
        %1336 = vmatpush1.xpose.msra.mxu0 0.0
        %1337 = vmatprep.subr.mxu0 0.0
        %1338 = vmatpush1.xpose.msra.mxu0 0.0
        %1339 = vmatprep.subr.mxu0 0.0
        %1340 = vmatpush1.xpose.msra.mxu0 0.0
        %1341 = vmatprep.subr.mxu0 0.0
        %1342 = vmatpush1.xpose.msra.mxu0 0.0
        %1343 = vmatprep.subr.mxu0 0.0
        %1344 = vmatpush1.xpose.msra.mxu0 0.0
        %1345 = vmatprep.subr.mxu0 0.0
        %1346 = vmatpush1.xpose.msra.mxu0 0.0
        %1347 = vmatprep.subr.mxu0 0.0
        %1348 = vmatpush1.xpose.msra.mxu0 0.0
        %1349 = vmatprep.subr.mxu0 0.0
        %1350 = vmatpush1.xpose.msra.mxu0 0.0
        %1351 = vmatprep.subr.mxu0 0.0
        %1352 = vmatpush1.xpose.msra.mxu0 0.0
        %1353 = vmatprep.mubr.f32.mxu0 0.0
        %1354 = vmatmul.mubr.f32.gmra.mrb[0].mxu0 %v1285
        %v1355 = vpop.f32.mrb[0].mxu0
        %v1356 = vadd.f32 %v1280, %v1355
        %v1357 = vpop.f32.mrb[0].mxu0
        %1358 = vdwg.mxu0
        %v1359 = vadd.f32 %v1356, %v841
        %v1360 = vsel %vm844, %v1359, -inf
        %1361 = vmax.xlane.f32.xlu0 %v1360
        %v1362 = vpop.xlane.xlu0 %1361
        %v1363 = vsub.f32 %v1359, %v1362
        %v1364 = vmul.f32 %v1363, 1.442695
        %v1365 = vpow.pop %v1364
        %v1366 = vsel %vm844, %v1365, 0.0
        %1367 = vadd.xlane.f32.xlu0 %v1366
        %v1368 = vpop.xlane.xlu0 %1367
        %v1369 = vrcp.pop %v1368
        %v1370 = vmul.f32 %v1365, %v1369
        %1371 = vrot.lane.b32.xlu0 %v755, 116
        %v1372 = vpop.permute.xlu0 %1371
        %v1375 = vsel %vm844, %v1370, 0
        %1377 = vmatprep.subr.mxu0 0.0
        %1378 = vmatpush1.msra.mxu0 %v1372
        %1379 = vmatprep.subr.mxu0 0.0
        %1380 = vmatpush1.msra.mxu0 0.0
        %1381 = vmatprep.subr.mxu0 0.0
        %1382 = vmatpush1.msra.mxu0 0.0
        %1383 = vmatprep.subr.mxu0 0.0
        %1384 = vmatpush1.msra.mxu0 0.0
        %1385 = vmatprep.subr.mxu0 0.0
        %1386 = vmatpush1.msra.mxu0 0.0
        %1387 = vmatprep.subr.mxu0 0.0
        %1388 = vmatpush1.msra.mxu0 0.0
        %1389 = vmatprep.subr.mxu0 0.0
        %1390 = vmatpush1.msra.mxu0 0.0
        %1391 = vmatprep.subr.mxu0 0.0
        %1392 = vmatpush1.msra.mxu0 0.0
        %1393 = vmatprep.subr.mxu0 0.0
        %1394 = vmatpush1.msra.mxu0 0.0
        %1395 = vmatprep.subr.mxu0 0.0
        %1396 = vmatpush1.msra.mxu0 0.0
        %1397 = vmatprep.subr.mxu0 0.0
        %1398 = vmatpush1.msra.mxu0 0.0
        %1399 = vmatprep.subr.mxu0 0.0
        %1400 = vmatpush1.msra.mxu0 0.0
        %1401 = vmatprep.subr.mxu0 0.0
        %1402 = vmatpush1.msra.mxu0 0.0
        %1403 = vmatprep.subr.mxu0 0.0
        %1404 = vmatpush1.msra.mxu0 0.0
        %1405 = vmatprep.subr.mxu0 0.0
        %1406 = vmatpush1.msra.mxu0 0.0
        %1407 = vmatprep.subr.mxu0 0.0
        %1408 = vmatpush1.msra.mxu0 0.0
        %1409 = vmatprep.subr.mxu0 0.0
        %1410 = vmatpush1.msra.mxu0 0.0
        %1411 = vmatprep.subr.mxu0 0.0
        %1412 = vmatpush1.msra.mxu0 0.0
        %1413 = vmatprep.subr.mxu0 0.0
        %1414 = vmatpush1.msra.mxu0 0.0
        %1415 = vmatprep.subr.mxu0 0.0
        %1416 = vmatpush1.msra.mxu0 0.0
        %1417 = vmatprep.subr.mxu0 0.0
        %1418 = vmatpush1.msra.mxu0 0.0
        %1419 = vmatprep.subr.mxu0 0.0
        %1420 = vmatpush1.msra.mxu0 0.0
        %1421 = vmatprep.subr.mxu0 0.0
        %1422 = vmatpush1.msra.mxu0 0.0
        %1423 = vmatprep.subr.mxu0 0.0
        %1424 = vmatpush1.msra.mxu0 0.0
        %1425 = vmatprep.subr.mxu0 0.0
        %1426 = vmatpush1.msra.mxu0 0.0
        %1427 = vmatprep.subr.mxu0 0.0
        %1428 = vmatpush1.msra.mxu0 0.0
        %1429 = vmatprep.subr.mxu0 0.0
        %1430 = vmatpush1.msra.mxu0 0.0
        %1431 = vmatprep.subr.mxu0 0.0
        %1432 = vmatpush1.msra.mxu0 0.0
        %1433 = vmatprep.subr.mxu0 0.0
        %1434 = vmatpush1.msra.mxu0 0.0
        %1435 = vmatprep.subr.mxu0 0.0
        %1436 = vmatpush1.msra.mxu0 0.0
        %1437 = vmatprep.subr.mxu0 0.0
        %1438 = vmatpush1.msra.mxu0 0.0
        %1439 = vmatprep.subr.mxu0 0.0
        %1440 = vmatpush1.msra.mxu0 0.0
        %1441 = vmatprep.mubr.f32.mxu0 0.0
        %1442 = vmatmul.mubr.f32.gmra.mrb[0].mxu0 %v1375
        %v1443 = vpop.f32.mrb[0].mxu0
        %v1444 = vadd.f32 0.0, %v1443
        %v1445 = vpop.f32.mrb[0].mxu0
        %1446 = vdwg.mxu0
        %1448 = vrot.lane.b32.xlu0 %v1444, 12
        %v1449 = vpop.permute.xlu0 %1448
        %vm1451 = vcmask 130144
        %1452 = vst.msk [vmem:[#allocation2] sm:$0xff] %vm1451, %v1449
        %v1453 = vld [vmem:[#allocation3] sm:$0xff]
        %v1454 = vld [vmem:[#allocation2] sm:$0xff]
        %v1455 = vld [vmem:[%s501] sm:$0xff]
        %v1456 = vld [vmem:[%s501 + $0x8] sm:$0xff]
        %vm1457 = vcmask 130048
        %v1459 = vsel %vm1457, %v1454, 0
        %1461 = vmatprep.subr.mxu0 0.0
        %1462 = vmatpush1.msra.mxu0 %v1455
        %1463 = vmatprep.subr.mxu0 0.0
        %1464 = vmatpush1.msra.mxu0 %v1456
        %1465 = vmatprep.subr.mxu0 0.0
        %1466 = vmatpush1.msra.mxu0 0.0
        %1467 = vmatprep.subr.mxu0 0.0
        %1468 = vmatpush1.msra.mxu0 0.0
        %1469 = vmatprep.subr.mxu0 0.0
        %1470 = vmatpush1.msra.mxu0 0.0
        %1471 = vmatprep.subr.mxu0 0.0
        %1472 = vmatpush1.msra.mxu0 0.0
        %1473 = vmatprep.subr.mxu0 0.0
        %1474 = vmatpush1.msra.mxu0 0.0
        %1475 = vmatprep.subr.mxu0 0.0
        %1476 = vmatpush1.msra.mxu0 0.0
        %1477 = vmatprep.subr.mxu0 0.0
        %1478 = vmatpush1.msra.mxu0 0.0
        %1479 = vmatprep.subr.mxu0 0.0
        %1480 = vmatpush1.msra.mxu0 0.0
        %1481 = vmatprep.subr.mxu0 0.0
        %1482 = vmatpush1.msra.mxu0 0.0
        %1483 = vmatprep.subr.mxu0 0.0
        %1484 = vmatpush1.msra.mxu0 0.0
        %1485 = vmatprep.subr.mxu0 0.0
        %1486 = vmatpush1.msra.mxu0 0.0
        %1487 = vmatprep.subr.mxu0 0.0
        %1488 = vmatpush1.msra.mxu0 0.0
        %1489 = vmatprep.subr.mxu0 0.0
        %1490 = vmatpush1.msra.mxu0 0.0
        %1491 = vmatprep.subr.mxu0 0.0
        %1492 = vmatpush1.msra.mxu0 0.0
        %1493 = vmatprep.subr.mxu0 0.0
        %1494 = vmatpush1.msra.mxu0 0.0
        %1495 = vmatprep.subr.mxu0 0.0
        %1496 = vmatpush1.msra.mxu0 0.0
        %1497 = vmatprep.subr.mxu0 0.0
        %1498 = vmatpush1.msra.mxu0 0.0
        %1499 = vmatprep.subr.mxu0 0.0
        %1500 = vmatpush1.msra.mxu0 0.0
        %1501 = vmatprep.subr.mxu0 0.0
        %1502 = vmatpush1.msra.mxu0 0.0
        %1503 = vmatprep.subr.mxu0 0.0
        %1504 = vmatpush1.msra.mxu0 0.0
        %1505 = vmatprep.subr.mxu0 0.0
        %1506 = vmatpush1.msra.mxu0 0.0
        %1507 = vmatprep.subr.mxu0 0.0
        %1508 = vmatpush1.msra.mxu0 0.0
        %1509 = vmatprep.subr.mxu0 0.0
        %1510 = vmatpush1.msra.mxu0 0.0
        %1511 = vmatprep.subr.mxu0 0.0
        %1512 = vmatpush1.msra.mxu0 0.0
        %1513 = vmatprep.subr.mxu0 0.0
        %1514 = vmatpush1.msra.mxu0 0.0
        %1515 = vmatprep.subr.mxu0 0.0
        %1516 = vmatpush1.msra.mxu0 0.0
        %1517 = vmatprep.subr.mxu0 0.0
        %1518 = vmatpush1.msra.mxu0 0.0
        %1519 = vmatprep.subr.mxu0 0.0
        %1520 = vmatpush1.msra.mxu0 0.0
        %1521 = vmatprep.subr.mxu0 0.0
        %1522 = vmatpush1.msra.mxu0 0.0
        %1523 = vmatprep.subr.mxu0 0.0
        %1524 = vmatpush1.msra.mxu0 0.0
        %1525 = vmatprep.mubr.f32.mxu0 0.0
        %1526 = vmatmul.mubr.f32.gmra.mrb[0].mxu0 %v1459
        %v1527 = vpop.f32.mrb[0].mxu0
        %v1528 = vadd.f32 0.0, %v1527
        %v1529 = vpop.f32.mrb[0].mxu0
        %1530 = vdwg.mxu0
        %v1531 = vadd.f32 %v1453, %v1528
        %1532 = vst.msk [vmem:[#allocation3] sm:$0xff] %vm529, %v1531
        %p1533 = scmp.eq.s32.totalorder %s29, 1
        // Predicated region
        $region65: #{tpu_custom_call.1} parent=59 // pred_check
          %p1534 = pneg %p1533
        $region66: #{tpu_custom_call.1} parent=59 // pred_check_branch
          %1536 = sbr.rel (%p1534) target = $region68
        $region67: #{tpu_custom_call.1} parent=59 // pred_region
          %v1537 = vld [vmem:[#allocation3] sm:$0xff]
          %v1538 = vld [vmem:[%s7] sm:$0x1]
          %v1540 = vlaneseq
          %v1541 = vshrl.u32 %v1540, 7
          %v1542 = vsub.s32 0, %v1541
          %v1543 = vrot.slane %v1538, %v1542
          %v1545 = vadd.f32 %v1537, %v1543
          %1546 = vst.msk [vmem:[%s471] sm:$0xff] %vm529, %v1545
        $region68: #{tpu_custom_call.1} parent=59 // pred_fallthru
          _
        %s1547 = sand.u32 %s299, 1
        %s1548 = scalar_lea.sflag [#allocation5], %s1547
        %s1549 = sand.u32 %s299, 1
        %s1550 = smul.addr %s1549, 8
        %s1551 = scalar_lea.vmem [#allocation4], %s1550
        // Predicated region
        $region69: #{tpu_custom_call.1} parent=59 // pred_check
          %p1552 = pneg %p309
        $region70: #{tpu_custom_call.1} parent=59 // pred_check_branch
          %1554 = sbr.rel (%p1552) target = $region72
        $region71: #{tpu_custom_call.1} parent=59 // pred_region
          %s1556 = ssub.s32 128, 128
          %1557 = vsyncadd %s1548, %s1556
          %s1558 = smul.addr %s28, 128
          %s1559 = scalar_lea.hbm %s10, %s1558
          %s1561 = sshll.u32 %s1551, 4
          %s1562 = int_to_ptr.vmem [resolvable:$true] %s1561
          %1564 = dma.vmem_to_hbm [thread:$0]  %s1562, 128, %s1559, %s1548
        $region72: #{tpu_custom_call.1} parent=59 // pred_fallthru
          _
      $region60: #{tpu_custom_call.1} parent=5 // pred_fallthru
        _
      %p1565 = scmp.le.s32.totalorder 2, %s19
      // Predicated region
      $region73: #{tpu_custom_call.1} parent=5 // pred_check
        %p1566 = pneg %p1565
      $region74: #{tpu_custom_call.1} parent=5 // pred_check_branch
        %1568 = sbr.rel (%p1566) target = $region76
      $region75: #{tpu_custom_call.1} parent=5 // pred_region
        %s1569 = ssub.s32 %s19, 2
        // Predicated region
        $region77: #{tpu_custom_call.1} parent=75 // pred_check
          %p1570 = pneg %p315
        $region78: #{tpu_custom_call.1} parent=75 // pred_check_branch
          %1572 = sbr.rel (%p1570) target = $region80
        $region79: #{tpu_custom_call.1} parent=75 // pred_region
          %s1573 = sand.u32 %s300, 1
          %s1574 = scalar_lea.sflag [#allocation5], %s1573
          %s1575 = sand.u32 %s300, 1
          %s1576 = smul.addr %s1575, 8
          %s1577 = scalar_lea.vmem [#allocation4], %s1576
          %1578 = dma.done %s1574, 128
        $region80: #{tpu_custom_call.1} parent=75 // pred_fallthru
          _
      $region76: #{tpu_custom_call.1} parent=5 // pred_fallthru
        _
    $region6: #{tpu_custom_call.1} parent=1 // loop_footer
      %s23 = sadd.s32 1, %s19
    $region7: #{tpu_custom_call.1} parent=1 // loop_footer_branch
      %18 = sbr.rel target = $region3
    $region8: #{tpu_custom_call.1} parent=1 // loop_exit
      _
    %1579 = vsyncpa [#allocation5], 1
    %s1580 = scalar_lea.sflag [#allocation5], 1
    %1581 = vsyncpa %s1580, 1

</llo_original>
